<compile_context>
chip_gen: v7x
topology: tpu7x:2x2x1
jax: 0.10.0
libtpu: 0.0.40
codegen_flags: <defaults>
</compile_context>

<pallas_src>
import functools

import jax
import jax.numpy as jnp
from jax.experimental import pallas as pl
from jax.experimental.pallas import tpu as pltpu

_BN_EPS = 1e-5


# ---------------------------------------------------------------------------
# helpers
# ---------------------------------------------------------------------------
def _silu(h):
    # exp() and the approx reciprocal both run on the EUP slot.
    return h * pl.reciprocal(1.0 + jnp.exp(-h), approx=True)


def _vmem_limit_bytes():
    """Per-generation scoped-VMEM limit (v5e/v6e: 128 MiB phys, v7x: 64 MiB)."""
    cap = 64 * 1024 * 1024  # conservative (v7x-sized) fallback
    try:
        cap = int(getattr(pltpu.get_tpu_info(), "vmem_capacity_bytes", cap))
    except Exception:
        pass
    return min((cap * 3) // 4, 100 * 1024 * 1024)


def _pick_lane_tile(hw):
    if hw % 128 != 0:
        # TODO(synk): masked partial lane tiles for H*W not a multiple of 128.
        return hw
    tile = min(hw, 512)
    while hw % tile != 0:
        tile -= 128
    return tile


# ---------------------------------------------------------------------------
# Fused path: whole map resident in VMEM, single grid-free pallas_call
# ---------------------------------------------------------------------------
def _fused_kernel(x_ref, w1_ref, g1_ref, b1_ref, w2_ref, g2_ref, b2_ref, o_ref):
    x = x_ref[...]                                        # (B, C, HW), native
    B = x.shape[0]
    inv_n = 1.0 / float(x.shape[0] * x.shape[2])
    xb = x.astype(jnp.bfloat16)

    def bn_silu(h, gamma, beta):
        # fused sum / sum-of-squares: one traversal, lane reduce then batch.
        s = jnp.sum(jnp.sum(h, axis=2, keepdims=True), axis=0, keepdims=True)
        ss = jnp.sum(jnp.sum(h * h, axis=2, keepdims=True), axis=0, keepdims=True)
        mu = s * inv_n
        var = jnp.maximum(ss * inv_n - mu * mu, 0.0)
        scale = gamma * jax.lax.rsqrt(var + _BN_EPS)      # (1, K, 1)
        return _silu(h * scale + (beta - mu * scale))

    # conv1 (1x1) == batched channel matmul on the MXU (no layout transpose).
    w1 = jnp.broadcast_to(w1_ref[...], (B,) + w1_ref.shape)
    h1 = jnp.einsum("bkc,bcm->bkm", w1, xb, preferred_element_type=jnp.float32)
    h1 = bn_silu(h1, g1_ref[...], b1_ref[...])

    w2 = jnp.broadcast_to(w2_ref[...], (B,) + w2_ref.shape)
    h2 = jnp.einsum("bkc,bcm->bkm", w2, h1.astype(jnp.bfloat16),
                    preferred_element_type=jnp.float32)
    h2 = bn_silu(h2, g2_ref[...], b2_ref[...])

    o_ref[...] = (x.astype(jnp.float32) + h2).astype(o_ref.dtype)


def _fused_forward(x_flat, w1, g1, b1, w2, g2, b2, out_dtype, vmem_limit):
    B, C, HW = x_flat.shape
    Ch = w1.shape[0]
    n = B * HW
    x_bytes = x_flat.size * x_flat.dtype.itemsize
    out_bytes = x_flat.size * jnp.dtype(out_dtype).itemsize
    return pl.pallas_call(
        _fused_kernel,
        out_shape=jax.ShapeDtypeStruct((B, C, HW), out_dtype),
        # No grid: single invocation, whole operands VMEM-resident, so no
        # useless double buffering of the (B, C, HW) blocks.
        compiler_params=pltpu.CompilerParams(vmem_limit_bytes=vmem_limit),
        cost_estimate=pl.CostEstimate(flops=4 * n * C * Ch,
                                      transcendentals=n * (C + Ch),
                                      bytes_accessed=x_bytes + out_bytes),
    )(x_flat, w1, g1, b1, w2, g2, b2)


# ---------------------------------------------------------------------------
# Tiled path: stats pass -> apply1/conv2 stats pass -> apply pass
# ---------------------------------------------------------------------------
def _first_step():
    return (pl.program_id(0) == 0) & (pl.program_id(1) == 0)


def _accum_channel_stats(h, sum_ref, ss_ref):
    @pl.when(_first_step())
    def _():
        sum_ref[...] = jnp.zeros_like(sum_ref)
        ss_ref[...] = jnp.zeros_like(ss_ref)
    sum_ref[...] += jnp.sum(h, axis=1, keepdims=True)
    ss_ref[...] += jnp.sum(h * h, axis=1, keepdims=True)


def _stats1_kernel(x_ref, w1_ref, sum_ref, ss_ref):
    h1 = jnp.dot(w1_ref[...], x_ref[0].astype(jnp.bfloat16),
                 preferred_element_type=jnp.float32)
    _accum_channel_stats(h1, sum_ref, ss_ref)


def _stats2_kernel(x_ref, w1_ref, sc1_ref, sh1_ref, w2_ref, sum_ref, ss_ref):
    h1 = jnp.dot(w1_ref[...], x_ref[0].astype(jnp.bfloat16),
                 preferred_element_type=jnp.float32)
    h1 = _silu(h1 * sc1_ref[...] + sh1_ref[...])
    h2 = jnp.dot(w2_ref[...], h1.astype(jnp.bfloat16),
                 preferred_element_type=jnp.float32)
    _accum_channel_stats(h2, sum_ref, ss_ref)


def _apply_kernel(x_ref, w1_ref, sc1_ref, sh1_ref, w2_ref, sc2_ref, sh2_ref, o_ref):
    x = x_ref[0]
    h1 = jnp.dot(w1_ref[...], x.astype(jnp.bfloat16),
                 preferred_element_type=jnp.float32)
    h1 = _silu(h1 * sc1_ref[...] + sh1_ref[...])
    h2 = jnp.dot(w2_ref[...], h1.astype(jnp.bfloat16),
                 preferred_element_type=jnp.float32)
    h2 = _silu(h2 * sc2_ref[...] + sh2_ref[...])
    o_ref[0] = (x.astype(jnp.float32) + h2).astype(o_ref.dtype)


def _tiled_forward(x_flat, w1, g1, b1, w2, g2, b2, out_dtype, vmem_limit):
    B, C, HW = x_flat.shape
    Ch = w1.shape[0]
    n = B * HW
    inv_n = 1.0 / float(n)
    tile = _pick_lane_tile(HW)
    grid = (B, HW // tile)

    x_spec = pl.BlockSpec((1, C, tile), lambda b, t: (b, 0, t))
    w1_spec = pl.BlockSpec((Ch, C), lambda b, t: (0, 0))
    w2_spec = pl.BlockSpec((C, Ch), lambda b, t: (0, 0))
    vch_spec = pl.BlockSpec((Ch, 1), lambda b, t: (0, 0))
    vc_spec = pl.BlockSpec((C, 1), lambda b, t: (0, 0))

    x_bytes = x_flat.size * x_flat.dtype.itemsize
    out_bytes = x_flat.size * jnp.dtype(out_dtype).itemsize
    mm_flops = 2 * n * C * Ch

    arbitrary = pltpu.CompilerParams(
        dimension_semantics=("arbitrary", "arbitrary"),
        vmem_limit_bytes=vmem_limit)
    parallel = pltpu.CompilerParams(
        dimension_semantics=("parallel", "parallel"),
        vmem_limit_bytes=vmem_limit)

    # pass 1: conv1 batch statistics (resident per-channel sum/sumsq blocks)
    sum1, ss1 = pl.pallas_call(
        _stats1_kernel,
        out_shape=(jax.ShapeDtypeStruct((Ch, 1), jnp.float32),
                   jax.ShapeDtypeStruct((Ch, 1), jnp.float32)),
        grid=grid,
        in_specs=[x_spec, w1_spec],
        out_specs=(vch_spec, vch_spec),
        compiler_params=arbitrary,
        cost_estimate=pl.CostEstimate(flops=mm_flops, transcendentals=0,
                                      bytes_accessed=x_bytes),
    )(x_flat, w1)
    mu1 = sum1 * inv_n
    scale1 = g1 * jax.lax.rsqrt(jnp.maximum(ss1 * inv_n - mu1 * mu1, 0.0) + _BN_EPS)
    shift1 = b1 - mu1 * scale1

    # pass 2: apply BN1+SiLU, conv2, accumulate conv2 batch statistics
    sum2, ss2 = pl.pallas_call(
        _stats2_kernel,
        out_shape=(jax.ShapeDtypeStruct((C, 1), jnp.float32),
                   jax.ShapeDtypeStruct((C, 1), jnp.float32)),
        grid=grid,
        in_specs=[x_spec, w1_spec, vch_spec, vch_spec, w2_spec],
        out_specs=(vc_spec, vc_spec),
        compiler_params=arbitrary,
        cost_estimate=pl.CostEstimate(flops=2 * mm_flops, transcendentals=n * Ch,
                                      bytes_accessed=x_bytes),
    )(x_flat, w1, scale1, shift1, w2)
    mu2 = sum2 * inv_n
    scale2 = g2 * jax.lax.rsqrt(jnp.maximum(ss2 * inv_n - mu2 * mu2, 0.0) + _BN_EPS)
    shift2 = b2 - mu2 * scale2

    # pass 3: full block + residual; fully parallel grid (v7x: both cores)
    return pl.pallas_call(
        _apply_kernel,
        out_shape=jax.ShapeDtypeStruct((B, C, HW), out_dtype),
        grid=grid,
        in_specs=[x_spec, w1_spec, vch_spec, vch_spec, w2_spec, vc_spec, vc_spec],
        out_specs=pl.BlockSpec((1, C, tile), lambda b, t: (b, 0, t)),
        compiler_params=parallel,
        cost_estimate=pl.CostEstimate(flops=2 * mm_flops,
                                      transcendentals=n * (C + Ch),
                                      bytes_accessed=x_bytes + out_bytes),
    )(x_flat, w1, scale1, shift1, w2, scale2, shift2)


# ---------------------------------------------------------------------------
# Public wrapper: NCHW in / NCHW out (PyTorch convention), no transposes
# ---------------------------------------------------------------------------
@functools.partial(jax.jit, static_argnames=("force_tiled",))
def darknet_block_forward(x_nchw, params, force_tiled=False):
    B, C, H, W = x_nchw.shape
    Ch = C // 2
    HW = H * W
    n = B * HW
    out_dtype = x_nchw.dtype

    # NCHW kept as-is (free reshape only); input stays in its native dtype.
    x_flat = x_nchw.reshape(B, C, HW)

    # PyTorch Conv2d weight (Cout, Cin, 1, 1) -> (Cout, Cin), bf16 for the MXU.
    w1 = params["w1"].reshape(Ch, C).astype(jnp.bfloat16)
    w2 = params["w2"].reshape(C, Ch).astype(jnp.bfloat16)
    g1 = params["gamma1"].reshape(Ch, 1).astype(jnp.float32)
    b1 = params["beta1"].reshape(Ch, 1).astype(jnp.float32)
    g2 = params["gamma2"].reshape(C, 1).astype(jnp.float32)
    b2 = params["beta2"].reshape(C, 1).astype(jnp.float32)

    vmem_limit = _vmem_limit_bytes()

    # Fused-path VMEM footprint: x (native) + bf16 copy + h1 (f32+bf16) +
    # h2 (f32) + output (f32), plus 50% headroom for compiler temporaries.
    itemsize = jnp.dtype(x_nchw.dtype).itemsize
    fused_bytes = (n * (C * itemsize + 2 * C + 6 * Ch + 4 * C + 4 * C) * 3) // 2
    use_fused = (not force_tiled) and fused_bytes <= (vmem_limit * 6) // 10

    if use_fused:
        out = _fused_forward(x_flat, w1, g1, b1, w2, g2, b2, out_dtype, vmem_limit)
    else:
        out = _tiled_forward(x_flat, w1, g1, b1, w2, g2, b2, out_dtype, vmem_limit)
    return out.reshape(B, C, H, W)


# ---------------------------------------------------------------------------
# Pure-JAX reference (f32 matmuls) for sanity checks
# ---------------------------------------------------------------------------
def _reference_forward(x_nchw, params):
    B, C, H, W = x_nchw.shape
    Ch = C // 2
    x = x_nchw.reshape(B, C, H * W).astype(jnp.float32)

    def bn_silu(h, g, b):
        mu = jnp.mean(h, axis=(0, 2), keepdims=True)
        var = jnp.mean((h - mu) ** 2, axis=(0, 2), keepdims=True)   # biased
        h = (h - mu) * jax.lax.rsqrt(var + _BN_EPS) * g.reshape(1, -1, 1) \
            + b.reshape(1, -1, 1)
        return h * jax.nn.sigmoid(h)

    h = bn_silu(jnp.einsum("kc,bcm->bkm", params["w1"].reshape(Ch, C), x),
                params["gamma1"], params["beta1"])
    h = bn_silu(jnp.einsum("kc,bcm->bkm", params["w2"].reshape(C, Ch), h),
                params["gamma2"], params["beta2"])
    return (x + h).reshape(B, C, H, W).astype(x_nchw.dtype)


if __name__ == "__main__":
    B, C, H, W = 2, 128, 16, 16
    Ch = C // 2

    keys = jax.random.split(jax.random.PRNGKey(0), 8)
    params = {
        # Conv biases omitted: they cancel exactly under train-mode BatchNorm.
        "w1": jax.random.normal(keys[0], (Ch, C, 1, 1), jnp.float32)
              / jnp.sqrt(float(C)),
        "gamma1": 1.0 + 0.1 * jax.random.normal(keys[1], (Ch,), jnp.float32),
        "beta1": 0.1 * jax.random.normal(keys[2], (Ch,), jnp.float32),
        "w2": jax.random.normal(keys[3], (C, Ch, 1, 1), jnp.float32)
              / jnp.sqrt(float(Ch)),
        "gamma2": 1.0 + 0.1 * jax.random.normal(keys[4], (C,), jnp.float32),
        "beta2": 0.1 * jax.random.normal(keys[5], (C,), jnp.float32),
    }

    # 1) small map -> fully fused path
    x = jax.random.normal(keys[6], (B, C, H, W), jnp.float32)
    out = darknet_block_forward(x, params)
    jax.block_until_ready(out)
    ref = _reference_forward(x, params)
    err = float(jnp.max(jnp.abs(out - ref)))
    assert out.shape == (B, C, H, W), out.shape
    assert out.dtype == x.dtype
    assert bool(jnp.all(jnp.isfinite(out)))
    assert err < 1e-1, f"fused path: max abs err vs reference: {err}"

    # 2) larger map, forced through the tiled stats/apply path (multi-step grid)
    x2 = jax.random.normal(keys[7], (2, C, 32, 32), jnp.float32)
    out2 = darknet_block_forward(x2, params, force_tiled=True)
    jax.block_until_ready(out2)
    ref2 = _reference_forward(x2, params)
    err2 = float(jnp.max(jnp.abs(out2 - ref2)))
    assert out2.shape == x2.shape
    assert bool(jnp.all(jnp.isfinite(out2)))
    assert err2 < 1e-1, f"tiled path: max abs err vs reference: {err2}"

    print("KERNEL_OK")
</pallas_src>

<mosaic_0001>
module attributes {stable_mosaic.version = 11 : i64} {
  func.func @_fused_kernel(%arg0: memref<2x128x256xf32, #tpu.memory_space<vmem>>, %arg1: memref<64x128xbf16, #tpu.memory_space<vmem>>, %arg2: memref<64x1xf32, #tpu.memory_space<vmem>>, %arg3: memref<64x1xf32, #tpu.memory_space<vmem>>, %arg4: memref<128x64xbf16, #tpu.memory_space<vmem>>, %arg5: memref<128x1xf32, #tpu.memory_space<vmem>>, %arg6: memref<128x1xf32, #tpu.memory_space<vmem>>, %arg7: memref<2x128x256xf32, #tpu.memory_space<vmem>>) attributes {dimension_semantics = [], scalar_prefetch = 0 : i64, scratch_operands = 0 : i64, tpu.core_type = #tpu.core_type<tc>} {
    %c0 = arith.constant 0 : index
    %c0_0 = arith.constant 0 : index
    %c0_1 = arith.constant 0 : index
    %0 = vector.load %arg0[%c0, %c0_0, %c0_1] : memref<2x128x256xf32, #tpu.memory_space<vmem>>, vector<2x128x256xf32>
    %1 = arith.truncf %0 : vector<2x128x256xf32> to vector<2x128x256xbf16>
    %c0_2 = arith.constant 0 : index
    %c0_3 = arith.constant 0 : index
    %2 = vector.load %arg1[%c0_2, %c0_3] : memref<64x128xbf16, #tpu.memory_space<vmem>>, vector<64x128xbf16>
    %3 = vector.shape_cast %2 : vector<64x128xbf16> to vector<1x64x128xbf16>
    %4 = vector.broadcast %3 : vector<1x64x128xbf16> to vector<2x64x128xbf16>
    "tpu.trace_start"() <{level = 10 : i32, message = "bkc,bcm->bkm"}> : () -> ()
    %cst = arith.constant dense<0.000000e+00> : vector<2x64x256xf32>
    %5 = tpu.matmul %4, %1, %cst {dimension_numbers = #tpu.dot_dimension_numbers<[2], [1], [1], [2], [0, 0, 0, 1, 1, 2], [0], [0]>} : vector<2x64x128xbf16>, vector<2x128x256xbf16>, vector<2x64x256xf32> -> vector<2x64x256xf32>
    "tpu.trace_stop"() : () -> ()
    %c0_4 = arith.constant 0 : index
    %c0_5 = arith.constant 0 : index
    %6 = vector.load %arg2[%c0_4, %c0_5] : memref<64x1xf32, #tpu.memory_space<vmem>>, vector<64x1xf32>
    %c0_6 = arith.constant 0 : index
    %c0_7 = arith.constant 0 : index
    %7 = vector.load %arg3[%c0_6, %c0_7] : memref<64x1xf32, #tpu.memory_space<vmem>>, vector<64x1xf32>
    %cst_8 = arith.constant dense<0.000000e+00> : vector<2x64xf32>
    %8 = vector.multi_reduction <add>, %5, %cst_8 [2] : vector<2x64x256xf32> to vector<2x64xf32>
    %9 = vector.shape_cast %8 : vector<2x64xf32> to vector<2x64x1xf32>
    %cst_9 = arith.constant dense<0.000000e+00> : vector<64x1xf32>
    %10 = vector.multi_reduction <add>, %9, %cst_9 [0] : vector<2x64x1xf32> to vector<64x1xf32>
    %11 = vector.shape_cast %10 : vector<64x1xf32> to vector<1x64x1xf32>
    %12 = arith.mulf %5, %5 : vector<2x64x256xf32>
    %cst_10 = arith.constant dense<0.000000e+00> : vector<2x64xf32>
    %13 = vector.multi_reduction <add>, %12, %cst_10 [2] : vector<2x64x256xf32> to vector<2x64xf32>
    %14 = vector.shape_cast %13 : vector<2x64xf32> to vector<2x64x1xf32>
    %cst_11 = arith.constant dense<0.000000e+00> : vector<64x1xf32>
    %15 = vector.multi_reduction <add>, %14, %cst_11 [0] : vector<2x64x1xf32> to vector<64x1xf32>
    %16 = vector.shape_cast %15 : vector<64x1xf32> to vector<1x64x1xf32>
    %cst_12 = arith.constant 0.001953125 : f32
    %17 = vector.broadcast %cst_12 : f32 to vector<1x64x1xf32>
    %18 = arith.mulf %11, %17 : vector<1x64x1xf32>
    %cst_13 = arith.constant 0.001953125 : f32
    %19 = vector.broadcast %cst_13 : f32 to vector<1x64x1xf32>
    %20 = arith.mulf %16, %19 : vector<1x64x1xf32>
    %21 = arith.mulf %18, %18 : vector<1x64x1xf32>
    %22 = arith.subf %20, %21 : vector<1x64x1xf32>
    %cst_14 = arith.constant 0.000000e+00 : f32
    %23 = vector.broadcast %cst_14 : f32 to vector<1x64x1xf32>
    %24 = arith.maximumf %22, %23 : vector<1x64x1xf32>
    %cst_15 = arith.constant 9.99999974E-6 : f32
    %25 = vector.broadcast %cst_15 : f32 to vector<1x64x1xf32>
    %26 = arith.addf %24, %25 : vector<1x64x1xf32>
    %27 = math.rsqrt %26 : vector<1x64x1xf32>
    %28 = vector.shape_cast %6 : vector<64x1xf32> to vector<1x64x1xf32>
    %29 = arith.mulf %28, %27 : vector<1x64x1xf32>
    %30 = vector.broadcast %29 : vector<1x64x1xf32> to vector<2x64x256xf32>
    %31 = arith.mulf %5, %30 : vector<2x64x256xf32>
    %32 = arith.mulf %18, %29 : vector<1x64x1xf32>
    %33 = vector.shape_cast %7 : vector<64x1xf32> to vector<1x64x1xf32>
    %34 = arith.subf %33, %32 : vector<1x64x1xf32>
    %35 = vector.broadcast %34 : vector<1x64x1xf32> to vector<2x64x256xf32>
    %36 = arith.addf %31, %35 : vector<2x64x256xf32>
    %cst_16 = arith.constant 0.000000e+00 : f32
    %37 = vector.broadcast %cst_16 : f32 to vector<2x64x256xf32>
    %38 = arith.subf %37, %36 : vector<2x64x256xf32>
    %39 = math.exp %38 : vector<2x64x256xf32>
    %cst_17 = arith.constant 1.000000e+00 : f32
    %40 = vector.broadcast %cst_17 : f32 to vector<2x64x256xf32>
    %41 = arith.addf %40, %39 : vector<2x64x256xf32>
    %42 = tpu.reciprocal %41 {approx = true} : vector<2x64x256xf32> -> vector<2x64x256xf32>
    %43 = arith.mulf %36, %42 : vector<2x64x256xf32>
    %c0_18 = arith.constant 0 : index
    %c0_19 = arith.constant 0 : index
    %44 = vector.load %arg4[%c0_18, %c0_19] : memref<128x64xbf16, #tpu.memory_space<vmem>>, vector<128x64xbf16>
    %45 = vector.shape_cast %44 : vector<128x64xbf16> to vector<1x128x64xbf16>
    %46 = vector.broadcast %45 : vector<1x128x64xbf16> to vector<2x128x64xbf16>
    %47 = arith.truncf %43 : vector<2x64x256xf32> to vector<2x64x256xbf16>
    "tpu.trace_start"() <{level = 10 : i32, message = "bkc,bcm->bkm"}> : () -> ()
    %cst_20 = arith.constant dense<0.000000e+00> : vector<2x128x256xf32>
    %48 = tpu.matmul %46, %47, %cst_20 {dimension_numbers = #tpu.dot_dimension_numbers<[2], [1], [1], [2], [0, 0, 0, 1, 1, 2], [0], [0]>} : vector<2x128x64xbf16>, vector<2x64x256xbf16>, vector<2x128x256xf32> -> vector<2x128x256xf32>
    "tpu.trace_stop"() : () -> ()
    %c0_21 = arith.constant 0 : index
    %c0_22 = arith.constant 0 : index
    %49 = vector.load %arg5[%c0_21, %c0_22] : memref<128x1xf32, #tpu.memory_space<vmem>>, vector<128x1xf32>
    %c0_23 = arith.constant 0 : index
    %c0_24 = arith.constant 0 : index
    %50 = vector.load %arg6[%c0_23, %c0_24] : memref<128x1xf32, #tpu.memory_space<vmem>>, vector<128x1xf32>
    %cst_25 = arith.constant dense<0.000000e+00> : vector<2x128xf32>
    %51 = vector.multi_reduction <add>, %48, %cst_25 [2] : vector<2x128x256xf32> to vector<2x128xf32>
    %52 = vector.shape_cast %51 : vector<2x128xf32> to vector<2x128x1xf32>
    %cst_26 = arith.constant dense<0.000000e+00> : vector<128x1xf32>
    %53 = vector.multi_reduction <add>, %52, %cst_26 [0] : vector<2x128x1xf32> to vector<128x1xf32>
    %54 = vector.shape_cast %53 : vector<128x1xf32> to vector<1x128x1xf32>
    %55 = arith.mulf %48, %48 : vector<2x128x256xf32>
    %cst_27 = arith.constant dense<0.000000e+00> : vector<2x128xf32>
    %56 = vector.multi_reduction <add>, %55, %cst_27 [2] : vector<2x128x256xf32> to vector<2x128xf32>
    %57 = vector.shape_cast %56 : vector<2x128xf32> to vector<2x128x1xf32>
    %cst_28 = arith.constant dense<0.000000e+00> : vector<128x1xf32>
    %58 = vector.multi_reduction <add>, %57, %cst_28 [0] : vector<2x128x1xf32> to vector<128x1xf32>
    %59 = vector.shape_cast %58 : vector<128x1xf32> to vector<1x128x1xf32>
    %cst_29 = arith.constant 0.001953125 : f32
    %60 = vector.broadcast %cst_29 : f32 to vector<1x128x1xf32>
    %61 = arith.mulf %54, %60 : vector<1x128x1xf32>
    %cst_30 = arith.constant 0.001953125 : f32
    %62 = vector.broadcast %cst_30 : f32 to vector<1x128x1xf32>
    %63 = arith.mulf %59, %62 : vector<1x128x1xf32>
    %64 = arith.mulf %61, %61 : vector<1x128x1xf32>
    %65 = arith.subf %63, %64 : vector<1x128x1xf32>
    %cst_31 = arith.constant 0.000000e+00 : f32
    %66 = vector.broadcast %cst_31 : f32 to vector<1x128x1xf32>
    %67 = arith.maximumf %65, %66 : vector<1x128x1xf32>
    %cst_32 = arith.constant 9.99999974E-6 : f32
    %68 = vector.broadcast %cst_32 : f32 to vector<1x128x1xf32>
    %69 = arith.addf %67, %68 : vector<1x128x1xf32>
    %70 = math.rsqrt %69 : vector<1x128x1xf32>
    %71 = vector.shape_cast %49 : vector<128x1xf32> to vector<1x128x1xf32>
    %72 = arith.mulf %71, %70 : vector<1x128x1xf32>
    %73 = vector.broadcast %72 : vector<1x128x1xf32> to vector<2x128x256xf32>
    %74 = arith.mulf %48, %73 : vector<2x128x256xf32>
    %75 = arith.mulf %61, %72 : vector<1x128x1xf32>
    %76 = vector.shape_cast %50 : vector<128x1xf32> to vector<1x128x1xf32>
    %77 = arith.subf %76, %75 : vector<1x128x1xf32>
    %78 = vector.broadcast %77 : vector<1x128x1xf32> to vector<2x128x256xf32>
    %79 = arith.addf %74, %78 : vector<2x128x256xf32>
    %cst_33 = arith.constant 0.000000e+00 : f32
    %80 = vector.broadcast %cst_33 : f32 to vector<2x128x256xf32>
    %81 = arith.subf %80, %79 : vector<2x128x256xf32>
    %82 = math.exp %81 : vector<2x128x256xf32>
    %cst_34 = arith.constant 1.000000e+00 : f32
    %83 = vector.broadcast %cst_34 : f32 to vector<2x128x256xf32>
    %84 = arith.addf %83, %82 : vector<2x128x256xf32>
    %85 = tpu.reciprocal %84 {approx = true} : vector<2x128x256xf32> -> vector<2x128x256xf32>
    %86 = arith.mulf %79, %85 : vector<2x128x256xf32>
    %87 = arith.addf %0, %86 : vector<2x128x256xf32>
    %c0_35 = arith.constant 0 : index
    %c0_36 = arith.constant 0 : index
    %c0_37 = arith.constant 0 : index
    %88 = vector.load %arg7[%c0_35, %c0_36, %c0_37] : memref<2x128x256xf32, #tpu.memory_space<vmem>>, vector<2x128x256xf32>
    tpu.vector_store %arg7[%c0_35, %c0_36, %c0_37], %87 {strides = array<i32>} : memref<2x128x256xf32, #tpu.memory_space<vmem>>, vector<2x128x256xf32>,
    return
  }
}

</mosaic_0001>

<llo_original>
// kernel: darknet_block_forward.1
$region0: #{darknet_block_forward.1}
  #allocation0 [shape = 'u32[]', space=smem, size = 0x4, offset = 0x4, fixed_abs, tag = 'smem constant byte address 0x4 - core index']
  #allocation1 [shape = 'u32[144,128]{1,0:T(1,128)}', space=vmem, size = 0x12000, scoped, tag = 'internal scratch']
  %s0 = inlined_call_operand.vmem [shape: f32[2,128,256], index: 0, kind: input, shape index: {}]
  %s1 = inlined_call_operand.vmem [shape: bf16[64,128], index: 1, kind: input, shape index: {}]
  %s2 = inlined_call_operand.vmem [shape: f32[64,1], index: 2, kind: input, shape index: {}]
  %s3 = inlined_call_operand.vmem [shape: f32[64,1], index: 3, kind: input, shape index: {}]
  %s4 = inlined_call_operand.vmem [shape: bf16[128,64], index: 4, kind: input, shape index: {}]
  %s5 = inlined_call_operand.vmem [shape: f32[128,1], index: 5, kind: input, shape index: {}]
  %s6 = inlined_call_operand.vmem [shape: f32[128,1], index: 6, kind: input, shape index: {}]
  %s7 = inlined_call_operand.vmem [shape: f32[2,128,256], index: 7, kind: output, shape index: {}]
  %s8 = sld [smem:[#allocation0]]
  $region38: #{darknet_block_forward.1} parent=0
    _
  %s10 = ssub.s32 1, %s8
  %s11 = scalar_select 0, %s10, %s8
  // Predicated region
  $region2: #{darknet_block_forward.1} parent=0 // pred_check
    _
  $region3: #{darknet_block_forward.1} parent=0 // pred_check_branch
    %13 = sbr.rel (0) target = $region5
  $region4: #{darknet_block_forward.1} parent=0 // pred_region
    _
  $region5: #{darknet_block_forward.1} parent=0 // pred_fallthru
    _
  // Predicated region
  $region6: #{darknet_block_forward.1} parent=0 // pred_check
    _
  $region7: #{darknet_block_forward.1} parent=0 // pred_check_branch
    %15 = sbr.rel (0) target = $region9
  $region8: #{darknet_block_forward.1} parent=0 // pred_region
    _
  $region9: #{darknet_block_forward.1} parent=0 // pred_fallthru
    _
  // Predicated region
  $region10: #{darknet_block_forward.1} parent=0 // pred_check
    _
  $region11: #{darknet_block_forward.1} parent=0 // pred_check_branch
    %17 = sbr.rel (0) target = $region13
  $region12: #{darknet_block_forward.1} parent=0 // pred_region
    _
  $region13: #{darknet_block_forward.1} parent=0 // pred_fallthru
    _
  // Predicated region
  $region14: #{darknet_block_forward.1} parent=0 // pred_check
    _
  $region15: #{darknet_block_forward.1} parent=0 // pred_check_branch
    %19 = sbr.rel (0) target = $region17
  $region16: #{darknet_block_forward.1} parent=0 // pred_region
    _
  $region17: #{darknet_block_forward.1} parent=0 // pred_fallthru
    _
  // Predicated region
  $region18: #{darknet_block_forward.1} parent=0 // pred_check
    _
  $region19: #{darknet_block_forward.1} parent=0 // pred_check_branch
    %21 = sbr.rel (0) target = $region21
  $region20: #{darknet_block_forward.1} parent=0 // pred_region
    _
  $region21: #{darknet_block_forward.1} parent=0 // pred_fallthru
    _
  // Predicated region
  $region22: #{darknet_block_forward.1} parent=0 // pred_check
    _
  $region23: #{darknet_block_forward.1} parent=0 // pred_check_branch
    %23 = sbr.rel (0) target = $region25
  $region24: #{darknet_block_forward.1} parent=0 // pred_region
    _
  $region25: #{darknet_block_forward.1} parent=0 // pred_fallthru
    _
  // Predicated region
  $region26: #{darknet_block_forward.1} parent=0 // pred_check
    _
  $region27: #{darknet_block_forward.1} parent=0 // pred_check_branch
    %25 = sbr.rel (0) target = $region29
  $region28: #{darknet_block_forward.1} parent=0 // pred_region
    _
  $region29: #{darknet_block_forward.1} parent=0 // pred_fallthru
    _
  %v27 = vld [vmem:[%s0] sm:$0xff]
  %v28 = vld [vmem:[%s0 + $0x8] sm:$0xff]
  %v29 = vld [vmem:[%s0 + $0x10] sm:$0xff]
  %v30 = vld [vmem:[%s0 + $0x18] sm:$0xff]
  %v31 = vld [vmem:[%s0 + $0x20] sm:$0xff]
  %v32 = vld [vmem:[%s0 + $0x28] sm:$0xff]
  %v33 = vld [vmem:[%s0 + $0x30] sm:$0xff]
  %v34 = vld [vmem:[%s0 + $0x38] sm:$0xff]
  %v35 = vld [vmem:[%s0 + $0x40] sm:$0xff]
  %v36 = vld [vmem:[%s0 + $0x48] sm:$0xff]
  %v37 = vld [vmem:[%s0 + $0x50] sm:$0xff]
  %v38 = vld [vmem:[%s0 + $0x58] sm:$0xff]
  %v39 = vld [vmem:[%s0 + $0x60] sm:$0xff]
  %v40 = vld [vmem:[%s0 + $0x68] sm:$0xff]
  %v41 = vld [vmem:[%s0 + $0x70] sm:$0xff]
  %v42 = vld [vmem:[%s0 + $0x78] sm:$0xff]
  %v43 = vld [vmem:[%s0 + $0x80] sm:$0xff]
  %v44 = vld [vmem:[%s0 + $0x88] sm:$0xff]
  %v45 = vld [vmem:[%s0 + $0x90] sm:$0xff]
  %v46 = vld [vmem:[%s0 + $0x98] sm:$0xff]
  %v47 = vld [vmem:[%s0 + $0xa0] sm:$0xff]
  %v48 = vld [vmem:[%s0 + $0xa8] sm:$0xff]
  %v49 = vld [vmem:[%s0 + $0xb0] sm:$0xff]
  %v50 = vld [vmem:[%s0 + $0xb8] sm:$0xff]
  %v51 = vld [vmem:[%s0 + $0xc0] sm:$0xff]
  %v52 = vld [vmem:[%s0 + $0xc8] sm:$0xff]
  %v53 = vld [vmem:[%s0 + $0xd0] sm:$0xff]
  %v54 = vld [vmem:[%s0 + $0xd8] sm:$0xff]
  %v55 = vld [vmem:[%s0 + $0xe0] sm:$0xff]
  %v56 = vld [vmem:[%s0 + $0xe8] sm:$0xff]
  %v57 = vld [vmem:[%s0 + $0xf0] sm:$0xff]
  %v58 = vld [vmem:[%s0 + $0xf8] sm:$0xff]
  %v59 = vld [vmem:[%s0 + $0x100] sm:$0xff]
  %v60 = vld [vmem:[%s0 + $0x108] sm:$0xff]
  %v61 = vld [vmem:[%s0 + $0x110] sm:$0xff]
  %v62 = vld [vmem:[%s0 + $0x118] sm:$0xff]
  %v63 = vld [vmem:[%s0 + $0x120] sm:$0xff]
  %v64 = vld [vmem:[%s0 + $0x128] sm:$0xff]
  %v65 = vld [vmem:[%s0 + $0x130] sm:$0xff]
  %v66 = vld [vmem:[%s0 + $0x138] sm:$0xff]
  %v67 = vld [vmem:[%s0 + $0x140] sm:$0xff]
  %v68 = vld [vmem:[%s0 + $0x148] sm:$0xff]
  %v69 = vld [vmem:[%s0 + $0x150] sm:$0xff]
  %v70 = vld [vmem:[%s0 + $0x158] sm:$0xff]
  %v71 = vld [vmem:[%s0 + $0x160] sm:$0xff]
  %v72 = vld [vmem:[%s0 + $0x168] sm:$0xff]
  %v73 = vld [vmem:[%s0 + $0x170] sm:$0xff]
  %v74 = vld [vmem:[%s0 + $0x178] sm:$0xff]
  %v75 = vld [vmem:[%s0 + $0x180] sm:$0xff]
  %v76 = vld [vmem:[%s0 + $0x188] sm:$0xff]
  %v77 = vld [vmem:[%s0 + $0x190] sm:$0xff]
  %v78 = vld [vmem:[%s0 + $0x198] sm:$0xff]
  %v79 = vld [vmem:[%s0 + $0x1a0] sm:$0xff]
  %v80 = vld [vmem:[%s0 + $0x1a8] sm:$0xff]
  %v81 = vld [vmem:[%s0 + $0x1b0] sm:$0xff]
  %v82 = vld [vmem:[%s0 + $0x1b8] sm:$0xff]
  %v83 = vld [vmem:[%s0 + $0x1c0] sm:$0xff]
  %v84 = vld [vmem:[%s0 + $0x1c8] sm:$0xff]
  %v85 = vld [vmem:[%s0 + $0x1d0] sm:$0xff]
  %v86 = vld [vmem:[%s0 + $0x1d8] sm:$0xff]
  %v87 = vld [vmem:[%s0 + $0x1e0] sm:$0xff]
  %v88 = vld [vmem:[%s0 + $0x1e8] sm:$0xff]
  %v89 = vld [vmem:[%s0 + $0x1f0] sm:$0xff]
  %v90 = vld [vmem:[%s0 + $0x1f8] sm:$0xff]
  %v91 = vpack.c.bf16 %v29, %v27
  %v92 = vpack.c.bf16 %v30, %v28
  %v93 = vpack.c.bf16 %v33, %v31
  %v94 = vpack.c.bf16 %v34, %v32
  %v95 = vpack.c.bf16 %v37, %v35
  %v96 = vpack.c.bf16 %v38, %v36
  %v97 = vpack.c.bf16 %v41, %v39
  %v98 = vpack.c.bf16 %v42, %v40
  %v99 = vpack.c.bf16 %v45, %v43
  %v100 = vpack.c.bf16 %v46, %v44
  %v101 = vpack.c.bf16 %v49, %v47
  %v102 = vpack.c.bf16 %v50, %v48
  %v103 = vpack.c.bf16 %v53, %v51
  %v104 = vpack.c.bf16 %v54, %v52
  %v105 = vpack.c.bf16 %v57, %v55
  %v106 = vpack.c.bf16 %v58, %v56
  %v107 = vpack.c.bf16 %v61, %v59
  %v108 = vpack.c.bf16 %v62, %v60
  %v109 = vpack.c.bf16 %v65, %v63
  %v110 = vpack.c.bf16 %v66, %v64
  %v111 = vpack.c.bf16 %v69, %v67
  %v112 = vpack.c.bf16 %v70, %v68
  %v113 = vpack.c.bf16 %v73, %v71
  %v114 = vpack.c.bf16 %v74, %v72
  %v115 = vpack.c.bf16 %v77, %v75
  %v116 = vpack.c.bf16 %v78, %v76
  %v117 = vpack.c.bf16 %v81, %v79
  %v118 = vpack.c.bf16 %v82, %v80
  %v119 = vpack.c.bf16 %v85, %v83
  %v120 = vpack.c.bf16 %v86, %v84
  %v121 = vpack.c.bf16 %v89, %v87
  %v122 = vpack.c.bf16 %v90, %v88
  %v123 = vld [vmem:[%s1] sm:$0xf]
  %v124 = vld [vmem:[%s1 + $0x4] sm:$0xf]
  %v125 = vld [vmem:[%s1 + $0x8] sm:$0xf]
  %v126 = vld [vmem:[%s1 + $0xc] sm:$0xf]
  %v127 = vld [vmem:[%s1 + $0x10] sm:$0xf]
  %v128 = vld [vmem:[%s1 + $0x14] sm:$0xf]
  %v129 = vld [vmem:[%s1 + $0x18] sm:$0xf]
  %v130 = vld [vmem:[%s1 + $0x1c] sm:$0xf]
  %v139 = vunpack.c.l.b16 %v123
  %v140 = vunpack.c.l.b16 %v124
  %v141 = vunpack.c.l.b16 %v125
  %v142 = vunpack.c.l.b16 %v126
  %v143 = vunpack.c.l.b16 %v127
  %v144 = vunpack.c.l.b16 %v128
  %v145 = vunpack.c.l.b16 %v129
  %v146 = vunpack.c.l.b16 %v130
  %v147 = vpack.c.b16 %v140, %v139
  %v148 = vpack.c.b16 %v142, %v141
  %v149 = vpack.c.b16 %v144, %v143
  %v150 = vpack.c.b16 %v146, %v145
  %155 = vmatprep.subr.bf16.mxu0 %v92
  %156 = vmatpush1.bf16.msra.mxu0 %v91
  %157 = vmatprep.subr.bf16.mxu0 %v94
  %158 = vmatpush1.bf16.msra.mxu0 %v93
  %159 = vmatprep.subr.bf16.mxu0 %v96
  %160 = vmatpush1.bf16.msra.mxu0 %v95
  %161 = vmatprep.subr.bf16.mxu0 %v98
  %162 = vmatpush1.bf16.msra.mxu0 %v97
  %163 = vmatprep.subr.bf16.mxu0 %v100
  %164 = vmatpush1.bf16.msra.mxu0 %v99
  %165 = vmatprep.subr.bf16.mxu0 %v102
  %166 = vmatpush1.bf16.msra.mxu0 %v101
  %167 = vmatprep.subr.bf16.mxu0 %v104
  %168 = vmatpush1.bf16.msra.mxu0 %v103
  %169 = vmatprep.subr.bf16.mxu0 %v106
  %170 = vmatpush1.bf16.msra.mxu0 %v105
  %171 = vmatprep.subr.bf16.mxu0 0
  %172 = vmatpush1.bf16.msra.mxu0 0
  %173 = vmatprep.subr.bf16.mxu0 0
  %174 = vmatpush1.bf16.msra.mxu0 0
  %175 = vmatprep.subr.bf16.mxu0 0
  %176 = vmatpush1.bf16.msra.mxu0 0
  %177 = vmatprep.subr.bf16.mxu0 0
  %178 = vmatpush1.bf16.msra.mxu0 0
  %179 = vmatprep.subr.bf16.mxu0 0
  %180 = vmatpush1.bf16.msra.mxu0 0
  %181 = vmatprep.subr.bf16.mxu0 0
  %182 = vmatpush1.bf16.msra.mxu0 0
  %183 = vmatprep.subr.bf16.mxu0 0
  %184 = vmatpush1.bf16.msra.mxu0 0
  %185 = vmatprep.subr.bf16.mxu0 0
  %186 = vmatpush1.bf16.msra.mxu0 0
  %187 = vmatprep.mubr.bf16.mxu0 0
  %188 = vmatmul.mubr.bf16.gmra.mrb[0].mxu0 %v147
  %v189 = vpop.f32.mrb[0].mxu0
  %v190 = vadd.f32 0.0, %v189
  %v191 = vpop.f32.mrb[0].mxu0
  %v192 = vadd.f32 0.0, %v191
  %v193 = vpop.f32.mrb[0].mxu0
  %v194 = vadd.f32 0.0, %v193
  %v195 = vpop.f32.mrb[0].mxu0
  %v196 = vadd.f32 0.0, %v195
  %197 = vmatprep.mubr.bf16.mxu0 0
  %198 = vmatmul.mubr.bf16.gmra.mrb[0].mxu0 %v148
  %v199 = vpop.f32.mrb[0].mxu0
  %v200 = vadd.f32 0.0, %v199
  %v201 = vpop.f32.mrb[0].mxu0
  %v202 = vadd.f32 0.0, %v201
  %v203 = vpop.f32.mrb[0].mxu0
  %v204 = vadd.f32 0.0, %v203
  %v205 = vpop.f32.mrb[0].mxu0
  %v206 = vadd.f32 0.0, %v205
  %207 = vmatprep.mubr.bf16.mxu0 0
  %208 = vmatmul.mubr.bf16.gmra.mrb[0].mxu0 %v149
  %v209 = vpop.f32.mrb[0].mxu0
  %v210 = vadd.f32 0.0, %v209
  %v211 = vpop.f32.mrb[0].mxu0
  %v212 = vadd.f32 0.0, %v211
  %v213 = vpop.f32.mrb[0].mxu0
  %v214 = vadd.f32 0.0, %v213
  %v215 = vpop.f32.mrb[0].mxu0
  %v216 = vadd.f32 0.0, %v215
  %217 = vmatprep.mubr.bf16.mxu0 0
  %218 = vmatmul.mubr.bf16.gmra.mrb[0].mxu0 %v150
  %v219 = vpop.f32.mrb[0].mxu0
  %v220 = vadd.f32 0.0, %v219
  %v221 = vpop.f32.mrb[0].mxu0
  %v222 = vadd.f32 0.0, %v221
  %v223 = vpop.f32.mrb[0].mxu0
  %v224 = vadd.f32 0.0, %v223
  %v225 = vpop.f32.mrb[0].mxu0
  %v226 = vadd.f32 0.0, %v225
  %227 = vdwg.mxu0
  %228 = vmatprep.subr.bf16.mxu0 %v108
  %229 = vmatpush1.bf16.msra.mxu0 %v107
  %230 = vmatprep.subr.bf16.mxu0 %v110
  %231 = vmatpush1.bf16.msra.mxu0 %v109
  %232 = vmatprep.subr.bf16.mxu0 %v112
  %233 = vmatpush1.bf16.msra.mxu0 %v111
  %234 = vmatprep.subr.bf16.mxu0 %v114
  %235 = vmatpush1.bf16.msra.mxu0 %v113
  %236 = vmatprep.subr.bf16.mxu0 %v116
  %237 = vmatpush1.bf16.msra.mxu0 %v115
  %238 = vmatprep.subr.bf16.mxu0 %v118
  %239 = vmatpush1.bf16.msra.mxu0 %v117
  %240 = vmatprep.subr.bf16.mxu0 %v120
  %241 = vmatpush1.bf16.msra.mxu0 %v119
  %242 = vmatprep.subr.bf16.mxu0 %v122
  %243 = vmatpush1.bf16.msra.mxu0 %v121
  %244 = vmatprep.subr.bf16.mxu0 0
  %245 = vmatpush1.bf16.msra.mxu0 0
  %246 = vmatprep.subr.bf16.mxu0 0
  %247 = vmatpush1.bf16.msra.mxu0 0
  %248 = vmatprep.subr.bf16.mxu0 0
  %249 = vmatpush1.bf16.msra.mxu0 0
  %250 = vmatprep.subr.bf16.mxu0 0
  %251 = vmatpush1.bf16.msra.mxu0 0
  %252 = vmatprep.subr.bf16.mxu0 0
  %253 = vmatpush1.bf16.msra.mxu0 0
  %254 = vmatprep.subr.bf16.mxu0 0
  %255 = vmatpush1.bf16.msra.mxu0 0
  %256 = vmatprep.subr.bf16.mxu0 0
  %257 = vmatpush1.bf16.msra.mxu0 0
  %258 = vmatprep.subr.bf16.mxu0 0
  %259 = vmatpush1.bf16.msra.mxu0 0
  %260 = vmatprep.mubr.bf16.mxu0 0
  %261 = vmatmul.mubr.bf16.gmra.mrb[0].mxu0 %v147
  %v262 = vpop.f32.mrb[0].mxu0
  %v263 = vadd.f32 0.0, %v262
  %v264 = vpop.f32.mrb[0].mxu0
  %v265 = vadd.f32 0.0, %v264
  %v266 = vpop.f32.mrb[0].mxu0
  %v267 = vadd.f32 0.0, %v266
  %v268 = vpop.f32.mrb[0].mxu0
  %v269 = vadd.f32 0.0, %v268
  %270 = vmatprep.mubr.bf16.mxu0 0
  %271 = vmatmul.mubr.bf16.gmra.mrb[0].mxu0 %v148
  %v272 = vpop.f32.mrb[0].mxu0
  %v273 = vadd.f32 0.0, %v272
  %v274 = vpop.f32.mrb[0].mxu0
  %v275 = vadd.f32 0.0, %v274
  %v276 = vpop.f32.mrb[0].mxu0
  %v277 = vadd.f32 0.0, %v276
  %v278 = vpop.f32.mrb[0].mxu0
  %v279 = vadd.f32 0.0, %v278
  %280 = vmatprep.mubr.bf16.mxu0 0
  %281 = vmatmul.mubr.bf16.gmra.mrb[0].mxu0 %v149
  %v282 = vpop.f32.mrb[0].mxu0
  %v283 = vadd.f32 0.0, %v282
  %v284 = vpop.f32.mrb[0].mxu0
  %v285 = vadd.f32 0.0, %v284
  %v286 = vpop.f32.mrb[0].mxu0
  %v287 = vadd.f32 0.0, %v286
  %v288 = vpop.f32.mrb[0].mxu0
  %v289 = vadd.f32 0.0, %v288
  %290 = vmatprep.mubr.bf16.mxu0 0
  %291 = vmatmul.mubr.bf16.gmra.mrb[0].mxu0 %v150
  %v292 = vpop.f32.mrb[0].mxu0
  %v293 = vadd.f32 0.0, %v292
  %v294 = vpop.f32.mrb[0].mxu0
  %v295 = vadd.f32 0.0, %v294
  %v296 = vpop.f32.mrb[0].mxu0
  %v297 = vadd.f32 0.0, %v296
  %v298 = vpop.f32.mrb[0].mxu0
  %v299 = vadd.f32 0.0, %v298
  %300 = vdwg.mxu0
  %v301 = vld [vmem:[%s2] sm:$0xff]
  %v302 = vld [vmem:[%s2 + $0x8] sm:$0xff]
  %v303 = vld [vmem:[%s2 + $0x10] sm:$0xff]
  %v304 = vld [vmem:[%s2 + $0x18] sm:$0xff]
  %v305 = vld [vmem:[%s2 + $0x20] sm:$0xff]
  %v306 = vld [vmem:[%s2 + $0x28] sm:$0xff]
  %v307 = vld [vmem:[%s2 + $0x30] sm:$0xff]
  %v308 = vld [vmem:[%s2 + $0x38] sm:$0xff]
  %v309 = vld [vmem:[%s3] sm:$0xff]
  %v310 = vld [vmem:[%s3 + $0x8] sm:$0xff]
  %v311 = vld [vmem:[%s3 + $0x10] sm:$0xff]
  %v312 = vld [vmem:[%s3 + $0x18] sm:$0xff]
  %v313 = vld [vmem:[%s3 + $0x20] sm:$0xff]
  %v314 = vld [vmem:[%s3 + $0x28] sm:$0xff]
  %v315 = vld [vmem:[%s3 + $0x30] sm:$0xff]
  %v316 = vld [vmem:[%s3 + $0x38] sm:$0xff]
  %v317 = vadd.f32 %v190, %v192
  %318 = vadd.xlane.f32.xlu0 %v317
  %v319 = vpop.xlane.xlu0 %318
  %v320 = vadd.f32 %v194, %v196
  %321 = vadd.xlane.f32.xlu0 %v320
  %v322 = vpop.xlane.xlu0 %321
  %v323 = vadd.f32 %v200, %v202
  %324 = vadd.xlane.f32.xlu0 %v323
  %v325 = vpop.xlane.xlu0 %324
  %v326 = vadd.f32 %v204, %v206
  %327 = vadd.xlane.f32.xlu0 %v326
  %v328 = vpop.xlane.xlu0 %327
  %v329 = vadd.f32 %v210, %v212
  %330 = vadd.xlane.f32.xlu0 %v329
  %v331 = vpop.xlane.xlu0 %330
  %v332 = vadd.f32 %v214, %v216
  %333 = vadd.xlane.f32.xlu0 %v332
  %v334 = vpop.xlane.xlu0 %333
  %v335 = vadd.f32 %v220, %v222
  %336 = vadd.xlane.f32.xlu0 %v335
  %v337 = vpop.xlane.xlu0 %336
  %v338 = vadd.f32 %v224, %v226
  %339 = vadd.xlane.f32.xlu0 %v338
  %v340 = vpop.xlane.xlu0 %339
  %v341 = vadd.f32 %v263, %v265
  %342 = vadd.xlane.f32.xlu0 %v341
  %v343 = vpop.xlane.xlu0 %342
  %v344 = vadd.f32 %v267, %v269
  %345 = vadd.xlane.f32.xlu0 %v344
  %v346 = vpop.xlane.xlu0 %345
  %v347 = vadd.f32 %v273, %v275
  %348 = vadd.xlane.f32.xlu0 %v347
  %v349 = vpop.xlane.xlu0 %348
  %v350 = vadd.f32 %v277, %v279
  %351 = vadd.xlane.f32.xlu0 %v350
  %v352 = vpop.xlane.xlu0 %351
  %v353 = vadd.f32 %v283, %v285
  %354 = vadd.xlane.f32.xlu0 %v353
  %v355 = vpop.xlane.xlu0 %354
  %v356 = vadd.f32 %v287, %v289
  %357 = vadd.xlane.f32.xlu0 %v356
  %v358 = vpop.xlane.xlu0 %357
  %v359 = vadd.f32 %v293, %v295
  %360 = vadd.xlane.f32.xlu0 %v359
  %v361 = vpop.xlane.xlu0 %360
  %v362 = vadd.f32 %v297, %v299
  %363 = vadd.xlane.f32.xlu0 %v362
  %v364 = vpop.xlane.xlu0 %363
  %v365 = vadd.f32 %v319, %v343
  %v366 = vadd.f32 %v322, %v346
  %v367 = vadd.f32 %v325, %v349
  %v368 = vadd.f32 %v328, %v352
  %v369 = vadd.f32 %v331, %v355
  %v370 = vadd.f32 %v334, %v358
  %v371 = vadd.f32 %v337, %v361
  %v372 = vadd.f32 %v340, %v364
  %v373 = vmul.f32 %v190, %v190
  %v374 = vmul.f32 %v192, %v192
  %v375 = vmul.f32 %v194, %v194
  %v376 = vmul.f32 %v196, %v196
  %v377 = vmul.f32 %v200, %v200
  %v378 = vmul.f32 %v202, %v202
  %v379 = vmul.f32 %v204, %v204
  %v380 = vmul.f32 %v206, %v206
  %v381 = vmul.f32 %v210, %v210
  %v382 = vmul.f32 %v212, %v212
  %v383 = vmul.f32 %v214, %v214
  %v384 = vmul.f32 %v216, %v216
  %v385 = vmul.f32 %v220, %v220
  %v386 = vmul.f32 %v222, %v222
  %v387 = vmul.f32 %v224, %v224
  %v388 = vmul.f32 %v226, %v226
  %v389 = vmul.f32 %v263, %v263
  %v390 = vmul.f32 %v265, %v265
  %v391 = vmul.f32 %v267, %v267
  %v392 = vmul.f32 %v269, %v269
  %v393 = vmul.f32 %v273, %v273
  %v394 = vmul.f32 %v275, %v275
  %v395 = vmul.f32 %v277, %v277
  %v396 = vmul.f32 %v279, %v279
  %v397 = vmul.f32 %v283, %v283
  %v398 = vmul.f32 %v285, %v285
  %v399 = vmul.f32 %v287, %v287
  %v400 = vmul.f32 %v289, %v289
  %v401 = vmul.f32 %v293, %v293
  %v402 = vmul.f32 %v295, %v295
  %v403 = vmul.f32 %v297, %v297
  %v404 = vmul.f32 %v299, %v299
  %v405 = vadd.f32 %v373, %v374
  %406 = vadd.xlane.f32.xlu0 %v405
  %v407 = vpop.xlane.xlu0 %406
  %v408 = vadd.f32 %v375, %v376
  %409 = vadd.xlane.f32.xlu0 %v408
  %v410 = vpop.xlane.xlu0 %409
  %v411 = vadd.f32 %v377, %v378
  %412 = vadd.xlane.f32.xlu0 %v411
  %v413 = vpop.xlane.xlu0 %412
  %v414 = vadd.f32 %v379, %v380
  %415 = vadd.xlane.f32.xlu0 %v414
  %v416 = vpop.xlane.xlu0 %415
  %v417 = vadd.f32 %v381, %v382
  %418 = vadd.xlane.f32.xlu0 %v417
  %v419 = vpop.xlane.xlu0 %418
  %v420 = vadd.f32 %v383, %v384
  %421 = vadd.xlane.f32.xlu0 %v420
  %v422 = vpop.xlane.xlu0 %421
  %v423 = vadd.f32 %v385, %v386
  %424 = vadd.xlane.f32.xlu0 %v423
  %v425 = vpop.xlane.xlu0 %424
  %v426 = vadd.f32 %v387, %v388
  %427 = vadd.xlane.f32.xlu0 %v426
  %v428 = vpop.xlane.xlu0 %427
  %v429 = vadd.f32 %v389, %v390
  %430 = vadd.xlane.f32.xlu0 %v429
  %v431 = vpop.xlane.xlu0 %430
  %v432 = vadd.f32 %v391, %v392
  %433 = vadd.xlane.f32.xlu0 %v432
  %v434 = vpop.xlane.xlu0 %433
  %v435 = vadd.f32 %v393, %v394
  %436 = vadd.xlane.f32.xlu0 %v435
  %v437 = vpop.xlane.xlu0 %436
  %v438 = vadd.f32 %v395, %v396
  %439 = vadd.xlane.f32.xlu0 %v438
  %v440 = vpop.xlane.xlu0 %439
  %v441 = vadd.f32 %v397, %v398
  %442 = vadd.xlane.f32.xlu0 %v441
  %v443 = vpop.xlane.xlu0 %442
  %v444 = vadd.f32 %v399, %v400
  %445 = vadd.xlane.f32.xlu0 %v444
  %v446 = vpop.xlane.xlu0 %445
  %v447 = vadd.f32 %v401, %v402
  %448 = vadd.xlane.f32.xlu0 %v447
  %v449 = vpop.xlane.xlu0 %448
  %v450 = vadd.f32 %v403, %v404
  %451 = vadd.xlane.f32.xlu0 %v450
  %v452 = vpop.xlane.xlu0 %451
  %v453 = vadd.f32 %v407, %v431
  %v454 = vadd.f32 %v410, %v434
  %v455 = vadd.f32 %v413, %v437
  %v456 = vadd.f32 %v416, %v440
  %v457 = vadd.f32 %v419, %v443
  %v458 = vadd.f32 %v422, %v446
  %v459 = vadd.f32 %v425, %v449
  %v460 = vadd.f32 %v428, %v452
  %v461 = vmul.f32 %v365, 0.001953125
  %v462 = vmul.f32 %v366, 0.001953125
  %v463 = vmul.f32 %v367, 0.001953125
  %v464 = vmul.f32 %v368, 0.001953125
  %v465 = vmul.f32 %v369, 0.001953125
  %v466 = vmul.f32 %v370, 0.001953125
  %v467 = vmul.f32 %v371, 0.001953125
  %v468 = vmul.f32 %v372, 0.001953125
  %v469 = vmul.f32 %v453, 0.001953125
  %v470 = vmul.f32 %v454, 0.001953125
  %v471 = vmul.f32 %v455, 0.001953125
  %v472 = vmul.f32 %v456, 0.001953125
  %v473 = vmul.f32 %v457, 0.001953125
  %v474 = vmul.f32 %v458, 0.001953125
  %v475 = vmul.f32 %v459, 0.001953125
  %v476 = vmul.f32 %v460, 0.001953125
  %v477 = vmul.f32 %v461, %v461
  %v478 = vmul.f32 %v462, %v462
  %v479 = vmul.f32 %v463, %v463
  %v480 = vmul.f32 %v464, %v464
  %v481 = vmul.f32 %v465, %v465
  %v482 = vmul.f32 %v466, %v466
  %v483 = vmul.f32 %v467, %v467
  %v484 = vmul.f32 %v468, %v468
  %v485 = vsub.f32 %v469, %v477
  %v486 = vsub.f32 %v470, %v478
  %v487 = vsub.f32 %v471, %v479
  %v488 = vsub.f32 %v472, %v480
  %v489 = vsub.f32 %v473, %v481
  %v490 = vsub.f32 %v474, %v482
  %v491 = vsub.f32 %v475, %v483
  %v492 = vsub.f32 %v476, %v484
  %v493 = vmax.f32 %v485, 0.0
  %v494 = vmax.f32 %v486, 0.0
  %v495 = vmax.f32 %v487, 0.0
  %v496 = vmax.f32 %v488, 0.0
  %v497 = vmax.f32 %v489, 0.0
  %v498 = vmax.f32 %v490, 0.0
  %v499 = vmax.f32 %v491, 0.0
  %v500 = vmax.f32 %v492, 0.0
  %v501 = vadd.f32 %v493, 1e-05
  %v502 = vadd.f32 %v494, 1e-05
  %v503 = vadd.f32 %v495, 1e-05
  %v504 = vadd.f32 %v496, 1e-05
  %v505 = vadd.f32 %v497, 1e-05
  %v506 = vadd.f32 %v498, 1e-05
  %v507 = vadd.f32 %v499, 1e-05
  %v508 = vadd.f32 %v500, 1e-05
  %v509 = vrsqrt.pop %v501
  %v510 = vrsqrt.pop %v502
  %v511 = vrsqrt.pop %v503
  %v512 = vrsqrt.pop %v504
  %v513 = vrsqrt.pop %v505
  %v514 = vrsqrt.pop %v506
  %v515 = vrsqrt.pop %v507
  %v516 = vrsqrt.pop %v508
  %v517 = vmul.f32 %v301, %v509
  %v518 = vmul.f32 %v302, %v510
  %v519 = vmul.f32 %v303, %v511
  %v520 = vmul.f32 %v304, %v512
  %v521 = vmul.f32 %v305, %v513
  %v522 = vmul.f32 %v306, %v514
  %v523 = vmul.f32 %v307, %v515
  %v524 = vmul.f32 %v308, %v516
  %526 = vset.pattern.permute.xlu0 0
  %527 = vperm.xlu0 %526, %v517
  %v528 = vpop.permute.xlu0 %527
  %531 = vset.pattern.permute.xlu0 0
  %532 = vperm.xlu0 %531, %v518
  %v533 = vpop.permute.xlu0 %532
  %536 = vset.pattern.permute.xlu0 0
  %537 = vperm.xlu0 %536, %v519
  %v538 = vpop.permute.xlu0 %537
  %541 = vset.pattern.permute.xlu0 0
  %542 = vperm.xlu0 %541, %v520
  %v543 = vpop.permute.xlu0 %542
  %546 = vset.pattern.permute.xlu0 0
  %547 = vperm.xlu0 %546, %v521
  %v548 = vpop.permute.xlu0 %547
  %551 = vset.pattern.permute.xlu0 0
  %552 = vperm.xlu0 %551, %v522
  %v553 = vpop.permute.xlu0 %552
  %556 = vset.pattern.permute.xlu0 0
  %557 = vperm.xlu0 %556, %v523
  %v558 = vpop.permute.xlu0 %557
  %561 = vset.pattern.permute.xlu0 0
  %562 = vperm.xlu0 %561, %v524
  %v563 = vpop.permute.xlu0 %562
  %v565 = vmul.f32 %v190, %v528
  %v566 = vmul.f32 %v192, %v528
  %v567 = vmul.f32 %v194, %v533
  %v568 = vmul.f32 %v196, %v533
  %v569 = vmul.f32 %v200, %v538
  %v570 = vmul.f32 %v202, %v538
  %v571 = vmul.f32 %v204, %v543
  %v572 = vmul.f32 %v206, %v543
  %v573 = vmul.f32 %v210, %v548
  %v574 = vmul.f32 %v212, %v548
  %v575 = vmul.f32 %v214, %v553
  %v576 = vmul.f32 %v216, %v553
  %v577 = vmul.f32 %v220, %v558
  %v578 = vmul.f32 %v222, %v558
  %v579 = vmul.f32 %v224, %v563
  %v580 = vmul.f32 %v226, %v563
  %v581 = vmul.f32 %v263, %v528
  %v582 = vmul.f32 %v265, %v528
  %v583 = vmul.f32 %v267, %v533
  %v584 = vmul.f32 %v269, %v533
  %v585 = vmul.f32 %v273, %v538
  %v586 = vmul.f32 %v275, %v538
  %v587 = vmul.f32 %v277, %v543
  %v588 = vmul.f32 %v279, %v543
  %v589 = vmul.f32 %v283, %v548
  %v590 = vmul.f32 %v285, %v548
  %v591 = vmul.f32 %v287, %v553
  %v592 = vmul.f32 %v289, %v553
  %v593 = vmul.f32 %v293, %v558
  %v594 = vmul.f32 %v295, %v558
  %v595 = vmul.f32 %v297, %v563
  %v596 = vmul.f32 %v299, %v563
  %v597 = vmul.f32 %v461, %v517
  %v598 = vmul.f32 %v462, %v518
  %v599 = vmul.f32 %v463, %v519
  %v600 = vmul.f32 %v464, %v520
  %v601 = vmul.f32 %v465, %v521
  %v602 = vmul.f32 %v466, %v522
  %v603 = vmul.f32 %v467, %v523
  %v604 = vmul.f32 %v468, %v524
  %v605 = vsub.f32 %v309, %v597
  %v606 = vsub.f32 %v310, %v598
  %v607 = vsub.f32 %v311, %v599
  %v608 = vsub.f32 %v312, %v600
  %v609 = vsub.f32 %v313, %v601
  %v610 = vsub.f32 %v314, %v602
  %v611 = vsub.f32 %v315, %v603
  %v612 = vsub.f32 %v316, %v604
  %614 = vset.pattern.permute.xlu0 0
  %615 = vperm.xlu0 %614, %v605
  %v616 = vpop.permute.xlu0 %615
  %619 = vset.pattern.permute.xlu0 0
  %620 = vperm.xlu0 %619, %v606
  %v621 = vpop.permute.xlu0 %620
  %624 = vset.pattern.permute.xlu0 0
  %625 = vperm.xlu0 %624, %v607
  %v626 = vpop.permute.xlu0 %625
  %629 = vset.pattern.permute.xlu0 0
  %630 = vperm.xlu0 %629, %v608
  %v631 = vpop.permute.xlu0 %630
  %634 = vset.pattern.permute.xlu0 0
  %635 = vperm.xlu0 %634, %v609
  %v636 = vpop.permute.xlu0 %635
  %639 = vset.pattern.permute.xlu0 0
  %640 = vperm.xlu0 %639, %v610
  %v641 = vpop.permute.xlu0 %640
  %644 = vset.pattern.permute.xlu0 0
  %645 = vperm.xlu0 %644, %v611
  %v646 = vpop.permute.xlu0 %645
  %649 = vset.pattern.permute.xlu0 0
  %650 = vperm.xlu0 %649, %v612
  %v651 = vpop.permute.xlu0 %650
  %v653 = vadd.f32 %v565, %v616
  %v654 = vadd.f32 %v566, %v616
  %v655 = vadd.f32 %v567, %v621
  %v656 = vadd.f32 %v568, %v621
  %v657 = vadd.f32 %v569, %v626
  %v658 = vadd.f32 %v570, %v626
  %v659 = vadd.f32 %v571, %v631
  %v660 = vadd.f32 %v572, %v631
  %v661 = vadd.f32 %v573, %v636
  %v662 = vadd.f32 %v574, %v636
  %v663 = vadd.f32 %v575, %v641
  %v664 = vadd.f32 %v576, %v641
  %v665 = vadd.f32 %v577, %v646
  %v666 = vadd.f32 %v578, %v646
  %v667 = vadd.f32 %v579, %v651
  %v668 = vadd.f32 %v580, %v651
  %v669 = vadd.f32 %v581, %v616
  %v670 = vadd.f32 %v582, %v616
  %v671 = vadd.f32 %v583, %v621
  %v672 = vadd.f32 %v584, %v621
  %v673 = vadd.f32 %v585, %v626
  %v674 = vadd.f32 %v586, %v626
  %v675 = vadd.f32 %v587, %v631
  %v676 = vadd.f32 %v588, %v631
  %v677 = vadd.f32 %v589, %v636
  %v678 = vadd.f32 %v590, %v636
  %v679 = vadd.f32 %v591, %v641
  %v680 = vadd.f32 %v592, %v641
  %v681 = vadd.f32 %v593, %v646
  %v682 = vadd.f32 %v594, %v646
  %v683 = vadd.f32 %v595, %v651
  %v684 = vadd.f32 %v596, %v651
  %v685 = vsub.f32 0.0, %v653
  %v686 = vsub.f32 0.0, %v654
  %v687 = vsub.f32 0.0, %v655
  %v688 = vsub.f32 0.0, %v656
  %v689 = vsub.f32 0.0, %v657
  %v690 = vsub.f32 0.0, %v658
  %v691 = vsub.f32 0.0, %v659
  %v692 = vsub.f32 0.0, %v660
  %v693 = vsub.f32 0.0, %v661
  %v694 = vsub.f32 0.0, %v662
  %v695 = vsub.f32 0.0, %v663
  %v696 = vsub.f32 0.0, %v664
  %v697 = vsub.f32 0.0, %v665
  %v698 = vsub.f32 0.0, %v666
  %v699 = vsub.f32 0.0, %v667
  %v700 = vsub.f32 0.0, %v668
  %v701 = vsub.f32 0.0, %v669
  %v702 = vsub.f32 0.0, %v670
  %v703 = vsub.f32 0.0, %v671
  %v704 = vsub.f32 0.0, %v672
  %v705 = vsub.f32 0.0, %v673
  %v706 = vsub.f32 0.0, %v674
  %v707 = vsub.f32 0.0, %v675
  %v708 = vsub.f32 0.0, %v676
  %v709 = vsub.f32 0.0, %v677
  %v710 = vsub.f32 0.0, %v678
  %v711 = vsub.f32 0.0, %v679
  %v712 = vsub.f32 0.0, %v680
  %v713 = vsub.f32 0.0, %v681
  %v714 = vsub.f32 0.0, %v682
  %v715 = vsub.f32 0.0, %v683
  %v716 = vsub.f32 0.0, %v684
  %v717 = vmul.f32 %v685, 1.442695
  %v718 = vpow.pop %v717
  %v719 = vmul.f32 %v686, 1.442695
  %v720 = vpow.pop %v719
  %v721 = vmul.f32 %v687, 1.442695
  %v722 = vpow.pop %v721
  %v723 = vmul.f32 %v688, 1.442695
  %v724 = vpow.pop %v723
  %v725 = vmul.f32 %v689, 1.442695
  %v726 = vpow.pop %v725
  %v727 = vmul.f32 %v690, 1.442695
  %v728 = vpow.pop %v727
  %v729 = vmul.f32 %v691, 1.442695
  %v730 = vpow.pop %v729
  %v731 = vmul.f32 %v692, 1.442695
  %v732 = vpow.pop %v731
  %v733 = vmul.f32 %v693, 1.442695
  %v734 = vpow.pop %v733
  %v735 = vmul.f32 %v694, 1.442695
  %v736 = vpow.pop %v735
  %v737 = vmul.f32 %v695, 1.442695
  %v738 = vpow.pop %v737
  %v739 = vmul.f32 %v696, 1.442695
  %v740 = vpow.pop %v739
  %v741 = vmul.f32 %v697, 1.442695
  %v742 = vpow.pop %v741
  %v743 = vmul.f32 %v698, 1.442695
  %v744 = vpow.pop %v743
  %v745 = vmul.f32 %v699, 1.442695
  %v746 = vpow.pop %v745
  %v747 = vmul.f32 %v700, 1.442695
  %v748 = vpow.pop %v747
  %v749 = vmul.f32 %v701, 1.442695
  %v750 = vpow.pop %v749
  %v751 = vmul.f32 %v702, 1.442695
  %v752 = vpow.pop %v751
  %v753 = vmul.f32 %v703, 1.442695
  %v754 = vpow.pop %v753
  %v755 = vmul.f32 %v704, 1.442695
  %v756 = vpow.pop %v755
  %v757 = vmul.f32 %v705, 1.442695
  %v758 = vpow.pop %v757
  %v759 = vmul.f32 %v706, 1.442695
  %v760 = vpow.pop %v759
  %v761 = vmul.f32 %v707, 1.442695
  %v762 = vpow.pop %v761
  %v763 = vmul.f32 %v708, 1.442695
  %v764 = vpow.pop %v763
  %v765 = vmul.f32 %v709, 1.442695
  %v766 = vpow.pop %v765
  %v767 = vmul.f32 %v710, 1.442695
  %v768 = vpow.pop %v767
  %v769 = vmul.f32 %v711, 1.442695
  %v770 = vpow.pop %v769
  %v771 = vmul.f32 %v712, 1.442695
  %v772 = vpow.pop %v771
  %v773 = vmul.f32 %v713, 1.442695
  %v774 = vpow.pop %v773
  %v775 = vmul.f32 %v714, 1.442695
  %v776 = vpow.pop %v775
  %v777 = vmul.f32 %v715, 1.442695
  %v778 = vpow.pop %v777
  %v779 = vmul.f32 %v716, 1.442695
  %v780 = vpow.pop %v779
  %v781 = vadd.f32 %v718, 1.0
  %v782 = vadd.f32 %v720, 1.0
  %v783 = vadd.f32 %v722, 1.0
  %v784 = vadd.f32 %v724, 1.0
  %v785 = vadd.f32 %v726, 1.0
  %v786 = vadd.f32 %v728, 1.0
  %v787 = vadd.f32 %v730, 1.0
  %v788 = vadd.f32 %v732, 1.0
  %v789 = vadd.f32 %v734, 1.0
  %v790 = vadd.f32 %v736, 1.0
  %v791 = vadd.f32 %v738, 1.0
  %v792 = vadd.f32 %v740, 1.0
  %v793 = vadd.f32 %v742, 1.0
  %v794 = vadd.f32 %v744, 1.0
  %v795 = vadd.f32 %v746, 1.0
  %v796 = vadd.f32 %v748, 1.0
  %v797 = vadd.f32 %v750, 1.0
  %v798 = vadd.f32 %v752, 1.0
  %v799 = vadd.f32 %v754, 1.0
  %v800 = vadd.f32 %v756, 1.0
  %v801 = vadd.f32 %v758, 1.0
  %v802 = vadd.f32 %v760, 1.0
  %v803 = vadd.f32 %v762, 1.0
  %v804 = vadd.f32 %v764, 1.0
  %v805 = vadd.f32 %v766, 1.0
  %v806 = vadd.f32 %v768, 1.0
  %v807 = vadd.f32 %v770, 1.0
  %v808 = vadd.f32 %v772, 1.0
  %v809 = vadd.f32 %v774, 1.0
  %v810 = vadd.f32 %v776, 1.0
  %v811 = vadd.f32 %v778, 1.0
  %v812 = vadd.f32 %v780, 1.0
  %v813 = vrcp.pop %v781
  %v814 = vrcp.pop %v782
  %v815 = vrcp.pop %v783
  %v816 = vrcp.pop %v784
  %v817 = vrcp.pop %v785
  %v818 = vrcp.pop %v786
  %v819 = vrcp.pop %v787
  %v820 = vrcp.pop %v788
  %v821 = vrcp.pop %v789
  %v822 = vrcp.pop %v790
  %v823 = vrcp.pop %v791
  %v824 = vrcp.pop %v792
  %v825 = vrcp.pop %v793
  %v826 = vrcp.pop %v794
  %v827 = vrcp.pop %v795
  %v828 = vrcp.pop %v796
  %v829 = vrcp.pop %v797
  %v830 = vrcp.pop %v798
  %v831 = vrcp.pop %v799
  %v832 = vrcp.pop %v800
  %v833 = vrcp.pop %v801
  %v834 = vrcp.pop %v802
  %v835 = vrcp.pop %v803
  %v836 = vrcp.pop %v804
  %v837 = vrcp.pop %v805
  %v838 = vrcp.pop %v806
  %v839 = vrcp.pop %v807
  %v840 = vrcp.pop %v808
  %v841 = vrcp.pop %v809
  %v842 = vrcp.pop %v810
  %v843 = vrcp.pop %v811
  %v844 = vrcp.pop %v812
  %v845 = vmul.f32 %v653, %v813
  %v846 = vmul.f32 %v654, %v814
  %v847 = vmul.f32 %v655, %v815
  %v848 = vmul.f32 %v656, %v816
  %v849 = vmul.f32 %v657, %v817
  %v850 = vmul.f32 %v658, %v818
  %v851 = vmul.f32 %v659, %v819
  %v852 = vmul.f32 %v660, %v820
  %v853 = vmul.f32 %v661, %v821
  %v854 = vmul.f32 %v662, %v822
  %v855 = vmul.f32 %v663, %v823
  %v856 = vmul.f32 %v664, %v824
  %v857 = vmul.f32 %v665, %v825
  %v858 = vmul.f32 %v666, %v826
  %v859 = vmul.f32 %v667, %v827
  %v860 = vmul.f32 %v668, %v828
  %v861 = vmul.f32 %v669, %v829
  %v862 = vmul.f32 %v670, %v830
  %v863 = vmul.f32 %v671, %v831
  %v864 = vmul.f32 %v672, %v832
  %v865 = vmul.f32 %v673, %v833
  %v866 = vmul.f32 %v674, %v834
  %v867 = vmul.f32 %v675, %v835
  %v868 = vmul.f32 %v676, %v836
  %v869 = vmul.f32 %v677, %v837
  %v870 = vmul.f32 %v678, %v838
  %v871 = vmul.f32 %v679, %v839
  %v872 = vmul.f32 %v680, %v840
  %v873 = vmul.f32 %v681, %v841
  %v874 = vmul.f32 %v682, %v842
  %v875 = vmul.f32 %v683, %v843
  %v876 = vmul.f32 %v684, %v844
  %v877 = vld [vmem:[%s4] sm:$0xf]
  %v878 = vld [vmem:[%s4 + $0x4] sm:$0xf]
  %v879 = vld [vmem:[%s4 + $0x8] sm:$0xf]
  %v880 = vld [vmem:[%s4 + $0xc] sm:$0xf]
  %v881 = vld [vmem:[%s4 + $0x10] sm:$0xf]
  %v882 = vld [vmem:[%s4 + $0x14] sm:$0xf]
  %v883 = vld [vmem:[%s4 + $0x18] sm:$0xf]
  %v884 = vld [vmem:[%s4 + $0x1c] sm:$0xf]
  %v885 = vld [vmem:[%s4 + $0x20] sm:$0xf]
  %v886 = vld [vmem:[%s4 + $0x24] sm:$0xf]
  %v887 = vld [vmem:[%s4 + $0x28] sm:$0xf]
  %v888 = vld [vmem:[%s4 + $0x2c] sm:$0xf]
  %v889 = vld [vmem:[%s4 + $0x30] sm:$0xf]
  %v890 = vld [vmem:[%s4 + $0x34] sm:$0xf]
  %v891 = vld [vmem:[%s4 + $0x38] sm:$0xf]
  %v892 = vld [vmem:[%s4 + $0x3c] sm:$0xf]
  %v893 = vpack.c.bf16 %v847, %v845
  %v894 = vpack.c.bf16 %v848, %v846
  %v895 = vpack.c.bf16 %v851, %v849
  %v896 = vpack.c.bf16 %v852, %v850
  %v897 = vpack.c.bf16 %v855, %v853
  %v898 = vpack.c.bf16 %v856, %v854
  %v899 = vpack.c.bf16 %v859, %v857
  %v900 = vpack.c.bf16 %v860, %v858
  %v901 = vpack.c.bf16 %v863, %v861
  %v902 = vpack.c.bf16 %v864, %v862
  %v903 = vpack.c.bf16 %v867, %v865
  %v904 = vpack.c.bf16 %v868, %v866
  %v905 = vpack.c.bf16 %v871, %v869
  %v906 = vpack.c.bf16 %v872, %v870
  %v907 = vpack.c.bf16 %v875, %v873
  %v908 = vpack.c.bf16 %v876, %v874
  %v925 = vunpack.c.l.b16 %v877
  %v926 = vunpack.c.l.b16 %v878
  %v927 = vunpack.c.l.b16 %v879
  %v928 = vunpack.c.l.b16 %v880
  %v929 = vunpack.c.l.b16 %v881
  %v930 = vunpack.c.l.b16 %v882
  %v931 = vunpack.c.l.b16 %v883
  %v932 = vunpack.c.l.b16 %v884
  %v933 = vunpack.c.l.b16 %v885
  %v934 = vunpack.c.l.b16 %v886
  %v935 = vunpack.c.l.b16 %v887
  %v936 = vunpack.c.l.b16 %v888
  %v937 = vunpack.c.l.b16 %v889
  %v938 = vunpack.c.l.b16 %v890
  %v939 = vunpack.c.l.b16 %v891
  %v940 = vunpack.c.l.b16 %v892
  %v941 = vpack.c.b16 %v926, %v925
  %v942 = vpack.c.b16 %v928, %v927
  %v943 = vpack.c.b16 %v930, %v929
  %v944 = vpack.c.b16 %v932, %v931
  %v945 = vpack.c.b16 %v934, %v933
  %v946 = vpack.c.b16 %v936, %v935
  %v947 = vpack.c.b16 %v938, %v937
  %v948 = vpack.c.b16 %v940, %v939
  %vm949 = vcmask 523264
  %v951 = vsel %vm949, %v941, 0
  %v954 = vsel %vm949, %v942, 0
  %v957 = vsel %vm949, %v943, 0
  %v960 = vsel %vm949, %v944, 0
  %v963 = vsel %vm949, %v945, 0
  %v966 = vsel %vm949, %v946, 0
  %v969 = vsel %vm949, %v947, 0
  %v972 = vsel %vm949, %v948, 0
  %974 = vmatprep.subr.bf16.mxu0 %v894
  %975 = vmatpush1.bf16.msra.mxu0 %v893
  %976 = vmatprep.subr.bf16.mxu0 %v896
  %977 = vmatpush1.bf16.msra.mxu0 %v895
  %978 = vmatprep.subr.bf16.mxu0 %v898
  %979 = vmatpush1.bf16.msra.mxu0 %v897
  %980 = vmatprep.subr.bf16.mxu0 %v900
  %981 = vmatpush1.bf16.msra.mxu0 %v899
  %982 = vmatprep.subr.bf16.mxu0 0
  %983 = vmatpush1.bf16.msra.mxu0 0
  %984 = vmatprep.subr.bf16.mxu0 0
  %985 = vmatpush1.bf16.msra.mxu0 0
  %986 = vmatprep.subr.bf16.mxu0 0
  %987 = vmatpush1.bf16.msra.mxu0 0
  %988 = vmatprep.subr.bf16.mxu0 0
  %989 = vmatpush1.bf16.msra.mxu0 0
  %990 = vmatprep.subr.bf16.mxu0 0
  %991 = vmatpush1.bf16.msra.mxu0 0
  %992 = vmatprep.subr.bf16.mxu0 0
  %993 = vmatpush1.bf16.msra.mxu0 0
  %994 = vmatprep.subr.bf16.mxu0 0
  %995 = vmatpush1.bf16.msra.mxu0 0
  %996 = vmatprep.subr.bf16.mxu0 0
  %997 = vmatpush1.bf16.msra.mxu0 0
  %998 = vmatprep.subr.bf16.mxu0 0
  %999 = vmatpush1.bf16.msra.mxu0 0
  %1000 = vmatprep.subr.bf16.mxu0 0
  %1001 = vmatpush1.bf16.msra.mxu0 0
  %1002 = vmatprep.subr.bf16.mxu0 0
  %1003 = vmatpush1.bf16.msra.mxu0 0
  %1004 = vmatprep.subr.bf16.mxu0 0
  %1005 = vmatpush1.bf16.msra.mxu0 0
  %1006 = vmatprep.mubr.bf16.mxu0 0
  %1007 = vmatmul.mubr.bf16.gmra.mrb[0].mxu0 %v951
  %v1008 = vpop.f32.mrb[0].mxu0
  %v1009 = vadd.f32 0.0, %v1008
  %v1010 = vpop.f32.mrb[0].mxu0
  %v1011 = vadd.f32 0.0, %v1010
  %v1012 = vpop.f32.mrb[0].mxu0
  %v1013 = vadd.f32 0.0, %v1012
  %v1014 = vpop.f32.mrb[0].mxu0
  %v1015 = vadd.f32 0.0, %v1014
  %1016 = vmatprep.mubr.bf16.mxu0 0
  %1017 = vmatmul.mubr.bf16.gmra.mrb[0].mxu0 %v954
  %v1018 = vpop.f32.mrb[0].mxu0
  %v1019 = vadd.f32 0.0, %v1018
  %v1020 = vpop.f32.mrb[0].mxu0
  %v1021 = vadd.f32 0.0, %v1020
  %v1022 = vpop.f32.mrb[0].mxu0
  %v1023 = vadd.f32 0.0, %v1022
  %v1024 = vpop.f32.mrb[0].mxu0
  %v1025 = vadd.f32 0.0, %v1024
  %1026 = vmatprep.mubr.bf16.mxu0 0
  %1027 = vmatmul.mubr.bf16.gmra.mrb[0].mxu0 %v957
  %v1028 = vpop.f32.mrb[0].mxu0
  %v1029 = vadd.f32 0.0, %v1028
  %v1030 = vpop.f32.mrb[0].mxu0
  %v1031 = vadd.f32 0.0, %v1030
  %v1032 = vpop.f32.mrb[0].mxu0
  %v1033 = vadd.f32 0.0, %v1032
  %v1034 = vpop.f32.mrb[0].mxu0
  %v1035 = vadd.f32 0.0, %v1034
  %1036 = vmatprep.mubr.bf16.mxu0 0
  %1037 = vmatmul.mubr.bf16.gmra.mrb[0].mxu0 %v960
  %v1038 = vpop.f32.mrb[0].mxu0
  %v1039 = vadd.f32 0.0, %v1038
  %v1040 = vpop.f32.mrb[0].mxu0
  %v1041 = vadd.f32 0.0, %v1040
  %v1042 = vpop.f32.mrb[0].mxu0
  %v1043 = vadd.f32 0.0, %v1042
  %v1044 = vpop.f32.mrb[0].mxu0
  %v1045 = vadd.f32 0.0, %v1044
  %1046 = vmatprep.mubr.bf16.mxu0 0
  %1047 = vmatmul.mubr.bf16.gmra.mrb[0].mxu0 %v963
  %v1048 = vpop.f32.mrb[0].mxu0
  %v1049 = vadd.f32 0.0, %v1048
  %v1050 = vpop.f32.mrb[0].mxu0
  %v1051 = vadd.f32 0.0, %v1050
  %v1052 = vpop.f32.mrb[0].mxu0
  %v1053 = vadd.f32 0.0, %v1052
  %v1054 = vpop.f32.mrb[0].mxu0
  %v1055 = vadd.f32 0.0, %v1054
  %1056 = vmatprep.mubr.bf16.mxu0 0
  %1057 = vmatmul.mubr.bf16.gmra.mrb[0].mxu0 %v966
  %v1058 = vpop.f32.mrb[0].mxu0
  %v1059 = vadd.f32 0.0, %v1058
  %v1060 = vpop.f32.mrb[0].mxu0
  %v1061 = vadd.f32 0.0, %v1060
  %v1062 = vpop.f32.mrb[0].mxu0
  %v1063 = vadd.f32 0.0, %v1062
  %v1064 = vpop.f32.mrb[0].mxu0
  %v1065 = vadd.f32 0.0, %v1064
  %1066 = vmatprep.mubr.bf16.mxu0 0
  %1067 = vmatmul.mubr.bf16.gmra.mrb[0].mxu0 %v969
  %v1068 = vpop.f32.mrb[0].mxu0
  %v1069 = vadd.f32 0.0, %v1068
  %v1070 = vpop.f32.mrb[0].mxu0
  %v1071 = vadd.f32 0.0, %v1070
  %v1072 = vpop.f32.mrb[0].mxu0
  %v1073 = vadd.f32 0.0, %v1072
  %v1074 = vpop.f32.mrb[0].mxu0
  %v1075 = vadd.f32 0.0, %v1074
  %1076 = vmatprep.mubr.bf16.mxu0 0
  %1077 = vmatmul.mubr.bf16.gmra.mrb[0].mxu0 %v972
  %v1078 = vpop.f32.mrb[0].mxu0
  %v1079 = vadd.f32 0.0, %v1078
  %v1080 = vpop.f32.mrb[0].mxu0
  %v1081 = vadd.f32 0.0, %v1080
  %v1082 = vpop.f32.mrb[0].mxu0
  %v1083 = vadd.f32 0.0, %v1082
  %v1084 = vpop.f32.mrb[0].mxu0
  %v1085 = vadd.f32 0.0, %v1084
  %1086 = vdwg.mxu0
  %1087 = vmatprep.subr.bf16.mxu0 %v902
  %1088 = vmatpush1.bf16.msra.mxu0 %v901
  %1089 = vmatprep.subr.bf16.mxu0 %v904
  %1090 = vmatpush1.bf16.msra.mxu0 %v903
  %1091 = vmatprep.subr.bf16.mxu0 %v906
  %1092 = vmatpush1.bf16.msra.mxu0 %v905
  %1093 = vmatprep.subr.bf16.mxu0 %v908
  %1094 = vmatpush1.bf16.msra.mxu0 %v907
  %1095 = vmatprep.subr.bf16.mxu0 0
  %1096 = vmatpush1.bf16.msra.mxu0 0
  %1097 = vmatprep.subr.bf16.mxu0 0
  %1098 = vmatpush1.bf16.msra.mxu0 0
  %1099 = vmatprep.subr.bf16.mxu0 0
  %1100 = vmatpush1.bf16.msra.mxu0 0
  %1101 = vmatprep.subr.bf16.mxu0 0
  %1102 = vmatpush1.bf16.msra.mxu0 0
  %1103 = vmatprep.subr.bf16.mxu0 0
  %1104 = vmatpush1.bf16.msra.mxu0 0
  %1105 = vmatprep.subr.bf16.mxu0 0
  %1106 = vmatpush1.bf16.msra.mxu0 0
  %1107 = vmatprep.subr.bf16.mxu0 0
  %1108 = vmatpush1.bf16.msra.mxu0 0
  %1109 = vmatprep.subr.bf16.mxu0 0
  %1110 = vmatpush1.bf16.msra.mxu0 0
  %1111 = vmatprep.subr.bf16.mxu0 0
  %1112 = vmatpush1.bf16.msra.mxu0 0
  %1113 = vmatprep.subr.bf16.mxu0 0
  %1114 = vmatpush1.bf16.msra.mxu0 0
  %1115 = vmatprep.subr.bf16.mxu0 0
  %1116 = vmatpush1.bf16.msra.mxu0 0
  %1117 = vmatprep.subr.bf16.mxu0 0
  %1118 = vmatpush1.bf16.msra.mxu0 0
  %1119 = vmatprep.mubr.bf16.mxu0 0
  %1120 = vmatmul.mubr.bf16.gmra.mrb[0].mxu0 %v951
  %v1121 = vpop.f32.mrb[0].mxu0
  %v1122 = vadd.f32 0.0, %v1121
  %v1123 = vpop.f32.mrb[0].mxu0
  %v1124 = vadd.f32 0.0, %v1123
  %v1125 = vpop.f32.mrb[0].mxu0
  %v1126 = vadd.f32 0.0, %v1125
  %v1127 = vpop.f32.mrb[0].mxu0
  %v1128 = vadd.f32 0.0, %v1127
  %1129 = vmatprep.mubr.bf16.mxu0 0
  %1130 = vmatmul.mubr.bf16.gmra.mrb[0].mxu0 %v954
  %v1131 = vpop.f32.mrb[0].mxu0
  %v1132 = vadd.f32 0.0, %v1131
  %v1133 = vpop.f32.mrb[0].mxu0
  %v1134 = vadd.f32 0.0, %v1133
  %v1135 = vpop.f32.mrb[0].mxu0
  %v1136 = vadd.f32 0.0, %v1135
  %v1137 = vpop.f32.mrb[0].mxu0
  %v1138 = vadd.f32 0.0, %v1137
  %1139 = vmatprep.mubr.bf16.mxu0 0
  %1140 = vmatmul.mubr.bf16.gmra.mrb[0].mxu0 %v957
  %v1141 = vpop.f32.mrb[0].mxu0
  %v1142 = vadd.f32 0.0, %v1141
  %v1143 = vpop.f32.mrb[0].mxu0
  %v1144 = vadd.f32 0.0, %v1143
  %v1145 = vpop.f32.mrb[0].mxu0
  %v1146 = vadd.f32 0.0, %v1145
  %v1147 = vpop.f32.mrb[0].mxu0
  %v1148 = vadd.f32 0.0, %v1147
  %1149 = vmatprep.mubr.bf16.mxu0 0
  %1150 = vmatmul.mubr.bf16.gmra.mrb[0].mxu0 %v960
  %v1151 = vpop.f32.mrb[0].mxu0
  %v1152 = vadd.f32 0.0, %v1151
  %v1153 = vpop.f32.mrb[0].mxu0
  %v1154 = vadd.f32 0.0, %v1153
  %v1155 = vpop.f32.mrb[0].mxu0
  %v1156 = vadd.f32 0.0, %v1155
  %v1157 = vpop.f32.mrb[0].mxu0
  %v1158 = vadd.f32 0.0, %v1157
  %1159 = vmatprep.mubr.bf16.mxu0 0
  %1160 = vmatmul.mubr.bf16.gmra.mrb[0].mxu0 %v963
  %v1161 = vpop.f32.mrb[0].mxu0
  %v1162 = vadd.f32 0.0, %v1161
  %v1163 = vpop.f32.mrb[0].mxu0
  %v1164 = vadd.f32 0.0, %v1163
  %v1165 = vpop.f32.mrb[0].mxu0
  %v1166 = vadd.f32 0.0, %v1165
  %v1167 = vpop.f32.mrb[0].mxu0
  %v1168 = vadd.f32 0.0, %v1167
  %1169 = vmatprep.mubr.bf16.mxu0 0
  %1170 = vmatmul.mubr.bf16.gmra.mrb[0].mxu0 %v966
  %v1171 = vpop.f32.mrb[0].mxu0
  %v1172 = vadd.f32 0.0, %v1171
  %v1173 = vpop.f32.mrb[0].mxu0
  %v1174 = vadd.f32 0.0, %v1173
  %v1175 = vpop.f32.mrb[0].mxu0
  %v1176 = vadd.f32 0.0, %v1175
  %v1177 = vpop.f32.mrb[0].mxu0
  %v1178 = vadd.f32 0.0, %v1177
  %1179 = vmatprep.mubr.bf16.mxu0 0
  %1180 = vmatmul.mubr.bf16.gmra.mrb[0].mxu0 %v969
  %v1181 = vpop.f32.mrb[0].mxu0
  %v1182 = vadd.f32 0.0, %v1181
  %v1183 = vpop.f32.mrb[0].mxu0
  %v1184 = vadd.f32 0.0, %v1183
  %v1185 = vpop.f32.mrb[0].mxu0
  %v1186 = vadd.f32 0.0, %v1185
  %v1187 = vpop.f32.mrb[0].mxu0
  %v1188 = vadd.f32 0.0, %v1187
  %1189 = vmatprep.mubr.bf16.mxu0 0
  %1190 = vmatmul.mubr.bf16.gmra.mrb[0].mxu0 %v972
  %v1191 = vpop.f32.mrb[0].mxu0
  %v1192 = vadd.f32 0.0, %v1191
  %v1193 = vpop.f32.mrb[0].mxu0
  %v1194 = vadd.f32 0.0, %v1193
  %v1195 = vpop.f32.mrb[0].mxu0
  %v1196 = vadd.f32 0.0, %v1195
  %v1197 = vpop.f32.mrb[0].mxu0
  %v1198 = vadd.f32 0.0, %v1197
  %1199 = vdwg.mxu0
  %v1200 = vld [vmem:[%s5] sm:$0xff]
  %v1201 = vld [vmem:[%s5 + $0x8] sm:$0xff]
  %v1202 = vld [vmem:[%s5 + $0x10] sm:$0xff]
  %v1203 = vld [vmem:[%s5 + $0x18] sm:$0xff]
  %v1204 = vld [vmem:[%s5 + $0x20] sm:$0xff]
  %v1205 = vld [vmem:[%s5 + $0x28] sm:$0xff]
  %v1206 = vld [vmem:[%s5 + $0x30] sm:$0xff]
  %v1207 = vld [vmem:[%s5 + $0x38] sm:$0xff]
  %v1208 = vld [vmem:[%s5 + $0x40] sm:$0xff]
  %v1209 = vld [vmem:[%s5 + $0x48] sm:$0xff]
  %v1210 = vld [vmem:[%s5 + $0x50] sm:$0xff]
  %v1211 = vld [vmem:[%s5 + $0x58] sm:$0xff]
  %v1212 = vld [vmem:[%s5 + $0x60] sm:$0xff]
  %v1213 = vld [vmem:[%s5 + $0x68] sm:$0xff]
  %v1214 = vld [vmem:[%s5 + $0x70] sm:$0xff]
  %v1215 = vld [vmem:[%s5 + $0x78] sm:$0xff]
  %v1216 = vld [vmem:[%s6] sm:$0xff]
  %v1217 = vld [vmem:[%s6 + $0x8] sm:$0xff]
  %v1218 = vld [vmem:[%s6 + $0x10] sm:$0xff]
  %v1219 = vld [vmem:[%s6 + $0x18] sm:$0xff]
  %v1220 = vld [vmem:[%s6 + $0x20] sm:$0xff]
  %v1221 = vld [vmem:[%s6 + $0x28] sm:$0xff]
  %v1222 = vld [vmem:[%s6 + $0x30] sm:$0xff]
  %v1223 = vld [vmem:[%s6 + $0x38] sm:$0xff]
  %v1224 = vld [vmem:[%s6 + $0x40] sm:$0xff]
  %v1225 = vld [vmem:[%s6 + $0x48] sm:$0xff]
  %v1226 = vld [vmem:[%s6 + $0x50] sm:$0xff]
  %v1227 = vld [vmem:[%s6 + $0x58] sm:$0xff]
  %v1228 = vld [vmem:[%s6 + $0x60] sm:$0xff]
  %v1229 = vld [vmem:[%s6 + $0x68] sm:$0xff]
  %v1230 = vld [vmem:[%s6 + $0x70] sm:$0xff]
  %v1231 = vld [vmem:[%s6 + $0x78] sm:$0xff]
  %v1232 = vadd.f32 %v1009, %v1011
  %1233 = vadd.xlane.f32.xlu0 %v1232
  %v1234 = vpop.xlane.xlu0 %1233
  %v1235 = vadd.f32 %v1013, %v1015
  %1236 = vadd.xlane.f32.xlu0 %v1235
  %v1237 = vpop.xlane.xlu0 %1236
  %v1238 = vadd.f32 %v1019, %v1021
  %1239 = vadd.xlane.f32.xlu0 %v1238
  %v1240 = vpop.xlane.xlu0 %1239
  %v1241 = vadd.f32 %v1023, %v1025
  %1242 = vadd.xlane.f32.xlu0 %v1241
  %v1243 = vpop.xlane.xlu0 %1242
  %v1244 = vadd.f32 %v1029, %v1031
  %1245 = vadd.xlane.f32.xlu0 %v1244
  %v1246 = vpop.xlane.xlu0 %1245
  %v1247 = vadd.f32 %v1033, %v1035
  %1248 = vadd.xlane.f32.xlu0 %v1247
  %v1249 = vpop.xlane.xlu0 %1248
  %v1250 = vadd.f32 %v1039, %v1041
  %1251 = vadd.xlane.f32.xlu0 %v1250
  %v1252 = vpop.xlane.xlu0 %1251
  %v1253 = vadd.f32 %v1043, %v1045
  %1254 = vadd.xlane.f32.xlu0 %v1253
  %v1255 = vpop.xlane.xlu0 %1254
  %v1256 = vadd.f32 %v1049, %v1051
  %1257 = vadd.xlane.f32.xlu0 %v1256
  %v1258 = vpop.xlane.xlu0 %1257
  %v1259 = vadd.f32 %v1053, %v1055
  %1260 = vadd.xlane.f32.xlu0 %v1259
  %v1261 = vpop.xlane.xlu0 %1260
  %v1262 = vadd.f32 %v1059, %v1061
  %1263 = vadd.xlane.f32.xlu0 %v1262
  %v1264 = vpop.xlane.xlu0 %1263
  %v1265 = vadd.f32 %v1063, %v1065
  %1266 = vadd.xlane.f32.xlu0 %v1265
  %v1267 = vpop.xlane.xlu0 %1266
  %v1268 = vadd.f32 %v1069, %v1071
  %1269 = vadd.xlane.f32.xlu0 %v1268
  %v1270 = vpop.xlane.xlu0 %1269
  %v1271 = vadd.f32 %v1073, %v1075
  %1272 = vadd.xlane.f32.xlu0 %v1271
  %v1273 = vpop.xlane.xlu0 %1272
  %v1274 = vadd.f32 %v1079, %v1081
  %1275 = vadd.xlane.f32.xlu0 %v1274
  %v1276 = vpop.xlane.xlu0 %1275
  %v1277 = vadd.f32 %v1083, %v1085
  %1278 = vadd.xlane.f32.xlu0 %v1277
  %v1279 = vpop.xlane.xlu0 %1278
  %v1280 = vadd.f32 %v1122, %v1124
  %1281 = vadd.xlane.f32.xlu0 %v1280
  %v1282 = vpop.xlane.xlu0 %1281
  %v1283 = vadd.f32 %v1126, %v1128
  %1284 = vadd.xlane.f32.xlu0 %v1283
  %v1285 = vpop.xlane.xlu0 %1284
  %v1286 = vadd.f32 %v1132, %v1134
  %1287 = vadd.xlane.f32.xlu0 %v1286
  %v1288 = vpop.xlane.xlu0 %1287
  %v1289 = vadd.f32 %v1136, %v1138
  %1290 = vadd.xlane.f32.xlu0 %v1289
  %v1291 = vpop.xlane.xlu0 %1290
  %v1292 = vadd.f32 %v1142, %v1144
  %1293 = vadd.xlane.f32.xlu0 %v1292
  %v1294 = vpop.xlane.xlu0 %1293
  %v1295 = vadd.f32 %v1146, %v1148
  %1296 = vadd.xlane.f32.xlu0 %v1295
  %v1297 = vpop.xlane.xlu0 %1296
  %v1298 = vadd.f32 %v1152, %v1154
  %1299 = vadd.xlane.f32.xlu0 %v1298
  %v1300 = vpop.xlane.xlu0 %1299
  %v1301 = vadd.f32 %v1156, %v1158
  %1302 = vadd.xlane.f32.xlu0 %v1301
  %v1303 = vpop.xlane.xlu0 %1302
  %v1304 = vadd.f32 %v1162, %v1164
  %1305 = vadd.xlane.f32.xlu0 %v1304
  %v1306 = vpop.xlane.xlu0 %1305
  %v1307 = vadd.f32 %v1166, %v1168
  %1308 = vadd.xlane.f32.xlu0 %v1307
  %v1309 = vpop.xlane.xlu0 %1308
  %v1310 = vadd.f32 %v1172, %v1174
  %1311 = vadd.xlane.f32.xlu0 %v1310
  %v1312 = vpop.xlane.xlu0 %1311
  %v1313 = vadd.f32 %v1176, %v1178
  %1314 = vadd.xlane.f32.xlu0 %v1313
  %v1315 = vpop.xlane.xlu0 %1314
  %v1316 = vadd.f32 %v1182, %v1184
  %1317 = vadd.xlane.f32.xlu0 %v1316
  %v1318 = vpop.xlane.xlu0 %1317
  %v1319 = vadd.f32 %v1186, %v1188
  %1320 = vadd.xlane.f32.xlu0 %v1319
  %v1321 = vpop.xlane.xlu0 %1320
  %v1322 = vadd.f32 %v1192, %v1194
  %1323 = vadd.xlane.f32.xlu0 %v1322
  %v1324 = vpop.xlane.xlu0 %1323
  %v1325 = vadd.f32 %v1196, %v1198
  %1326 = vadd.xlane.f32.xlu0 %v1325
  %v1327 = vpop.xlane.xlu0 %1326
  %v1328 = vadd.f32 %v1234, %v1282
  %v1329 = vadd.f32 %v1237, %v1285
  %v1330 = vadd.f32 %v1240, %v1288
  %v1331 = vadd.f32 %v1243, %v1291
  %v1332 = vadd.f32 %v1246, %v1294
  %v1333 = vadd.f32 %v1249, %v1297
  %v1334 = vadd.f32 %v1252, %v1300
  %v1335 = vadd.f32 %v1255, %v1303
  %v1336 = vadd.f32 %v1258, %v1306
  %v1337 = vadd.f32 %v1261, %v1309
  %v1338 = vadd.f32 %v1264, %v1312
  %v1339 = vadd.f32 %v1267, %v1315
  %v1340 = vadd.f32 %v1270, %v1318
  %v1341 = vadd.f32 %v1273, %v1321
  %v1342 = vadd.f32 %v1276, %v1324
  %v1343 = vadd.f32 %v1279, %v1327
  %v1344 = vmul.f32 %v1009, %v1009
  %v1345 = vmul.f32 %v1011, %v1011
  %v1346 = vmul.f32 %v1013, %v1013
  %v1347 = vmul.f32 %v1015, %v1015
  %v1348 = vmul.f32 %v1019, %v1019
  %v1349 = vmul.f32 %v1021, %v1021
  %v1350 = vmul.f32 %v1023, %v1023
  %v1351 = vmul.f32 %v1025, %v1025
  %v1352 = vmul.f32 %v1029, %v1029
  %v1353 = vmul.f32 %v1031, %v1031
  %v1354 = vmul.f32 %v1033, %v1033
  %v1355 = vmul.f32 %v1035, %v1035
  %v1356 = vmul.f32 %v1039, %v1039
  %v1357 = vmul.f32 %v1041, %v1041
  %v1358 = vmul.f32 %v1043, %v1043
  %v1359 = vmul.f32 %v1045, %v1045
  %v1360 = vmul.f32 %v1049, %v1049
  %v1361 = vmul.f32 %v1051, %v1051
  %v1362 = vmul.f32 %v1053, %v1053
  %v1363 = vmul.f32 %v1055, %v1055
  %v1364 = vmul.f32 %v1059, %v1059
  %v1365 = vmul.f32 %v1061, %v1061
  %v1366 = vmul.f32 %v1063, %v1063
  %v1367 = vmul.f32 %v1065, %v1065
  %v1368 = vmul.f32 %v1069, %v1069
  %v1369 = vmul.f32 %v1071, %v1071
  %v1370 = vmul.f32 %v1073, %v1073
  %v1371 = vmul.f32 %v1075, %v1075
  %v1372 = vmul.f32 %v1079, %v1079
  %v1373 = vmul.f32 %v1081, %v1081
  %v1374 = vmul.f32 %v1083, %v1083
  %v1375 = vmul.f32 %v1085, %v1085
  %v1376 = vmul.f32 %v1122, %v1122
  %v1377 = vmul.f32 %v1124, %v1124
  %v1378 = vmul.f32 %v1126, %v1126
  %v1379 = vmul.f32 %v1128, %v1128
  %v1380 = vmul.f32 %v1132, %v1132
  %v1381 = vmul.f32 %v1134, %v1134
  %v1382 = vmul.f32 %v1136, %v1136
  %v1383 = vmul.f32 %v1138, %v1138
  %v1384 = vmul.f32 %v1142, %v1142
  %v1385 = vmul.f32 %v1144, %v1144
  %v1386 = vmul.f32 %v1146, %v1146
  %v1387 = vmul.f32 %v1148, %v1148
  %v1388 = vmul.f32 %v1152, %v1152
  %v1389 = vmul.f32 %v1154, %v1154
  %v1390 = vmul.f32 %v1156, %v1156
  %v1391 = vmul.f32 %v1158, %v1158
  %v1392 = vmul.f32 %v1162, %v1162
  %v1393 = vmul.f32 %v1164, %v1164
  %v1394 = vmul.f32 %v1166, %v1166
  %v1395 = vmul.f32 %v1168, %v1168
  %v1396 = vmul.f32 %v1172, %v1172
  %v1397 = vmul.f32 %v1174, %v1174
  %v1398 = vmul.f32 %v1176, %v1176
  %v1399 = vmul.f32 %v1178, %v1178
  %v1400 = vmul.f32 %v1182, %v1182
  %v1401 = vmul.f32 %v1184, %v1184
  %v1402 = vmul.f32 %v1186, %v1186
  %v1403 = vmul.f32 %v1188, %v1188
  %v1404 = vmul.f32 %v1192, %v1192
  %v1405 = vmul.f32 %v1194, %v1194
  %v1406 = vmul.f32 %v1196, %v1196
  %v1407 = vmul.f32 %v1198, %v1198
  %v1408 = vadd.f32 %v1344, %v1345
  %1409 = vadd.xlane.f32.xlu0 %v1408
  %v1410 = vpop.xlane.xlu0 %1409
  %v1411 = vadd.f32 %v1346, %v1347
  %1412 = vadd.xlane.f32.xlu0 %v1411
  %v1413 = vpop.xlane.xlu0 %1412
  %v1414 = vadd.f32 %v1348, %v1349
  %1415 = vadd.xlane.f32.xlu0 %v1414
  %v1416 = vpop.xlane.xlu0 %1415
  %v1417 = vadd.f32 %v1350, %v1351
  %1418 = vadd.xlane.f32.xlu0 %v1417
  %v1419 = vpop.xlane.xlu0 %1418
  %v1420 = vadd.f32 %v1352, %v1353
  %1421 = vadd.xlane.f32.xlu0 %v1420
  %v1422 = vpop.xlane.xlu0 %1421
  %v1423 = vadd.f32 %v1354, %v1355
  %1424 = vadd.xlane.f32.xlu0 %v1423
  %v1425 = vpop.xlane.xlu0 %1424
  %v1426 = vadd.f32 %v1356, %v1357
  %1427 = vadd.xlane.f32.xlu0 %v1426
  %v1428 = vpop.xlane.xlu0 %1427
  %v1429 = vadd.f32 %v1358, %v1359
  %1430 = vadd.xlane.f32.xlu0 %v1429
  %v1431 = vpop.xlane.xlu0 %1430
  %v1432 = vadd.f32 %v1360, %v1361
  %1433 = vadd.xlane.f32.xlu0 %v1432
  %v1434 = vpop.xlane.xlu0 %1433
  %v1435 = vadd.f32 %v1362, %v1363
  %1436 = vadd.xlane.f32.xlu0 %v1435
  %v1437 = vpop.xlane.xlu0 %1436
  %v1438 = vadd.f32 %v1364, %v1365
  %1439 = vadd.xlane.f32.xlu0 %v1438
  %v1440 = vpop.xlane.xlu0 %1439
  %v1441 = vadd.f32 %v1366, %v1367
  %1442 = vadd.xlane.f32.xlu0 %v1441
  %v1443 = vpop.xlane.xlu0 %1442
  %v1444 = vadd.f32 %v1368, %v1369
  %1445 = vadd.xlane.f32.xlu0 %v1444
  %v1446 = vpop.xlane.xlu0 %1445
  %v1447 = vadd.f32 %v1370, %v1371
  %1448 = vadd.xlane.f32.xlu0 %v1447
  %v1449 = vpop.xlane.xlu0 %1448
  %v1450 = vadd.f32 %v1372, %v1373
  %1451 = vadd.xlane.f32.xlu0 %v1450
  %v1452 = vpop.xlane.xlu0 %1451
  %v1453 = vadd.f32 %v1374, %v1375
  %1454 = vadd.xlane.f32.xlu0 %v1453
  %v1455 = vpop.xlane.xlu0 %1454
  %v1456 = vadd.f32 %v1376, %v1377
  %1457 = vadd.xlane.f32.xlu0 %v1456
  %v1458 = vpop.xlane.xlu0 %1457
  %v1459 = vadd.f32 %v1378, %v1379
  %1460 = vadd.xlane.f32.xlu0 %v1459
  %v1461 = vpop.xlane.xlu0 %1460
  %v1462 = vadd.f32 %v1380, %v1381
  %1463 = vadd.xlane.f32.xlu0 %v1462
  %v1464 = vpop.xlane.xlu0 %1463
  %v1465 = vadd.f32 %v1382, %v1383
  %1466 = vadd.xlane.f32.xlu0 %v1465
  %v1467 = vpop.xlane.xlu0 %1466
  %v1468 = vadd.f32 %v1384, %v1385
  %1469 = vadd.xlane.f32.xlu0 %v1468
  %v1470 = vpop.xlane.xlu0 %1469
  %v1471 = vadd.f32 %v1386, %v1387
  %1472 = vadd.xlane.f32.xlu0 %v1471
  %v1473 = vpop.xlane.xlu0 %1472
  %v1474 = vadd.f32 %v1388, %v1389
  %1475 = vadd.xlane.f32.xlu0 %v1474
  %v1476 = vpop.xlane.xlu0 %1475
  %v1477 = vadd.f32 %v1390, %v1391
  %1478 = vadd.xlane.f32.xlu0 %v1477
  %v1479 = vpop.xlane.xlu0 %1478
  %v1480 = vadd.f32 %v1392, %v1393
  %1481 = vadd.xlane.f32.xlu0 %v1480
  %v1482 = vpop.xlane.xlu0 %1481
  %v1483 = vadd.f32 %v1394, %v1395
  %1484 = vadd.xlane.f32.xlu0 %v1483
  %v1485 = vpop.xlane.xlu0 %1484
  %v1486 = vadd.f32 %v1396, %v1397
  %1487 = vadd.xlane.f32.xlu0 %v1486
  %v1488 = vpop.xlane.xlu0 %1487
  %v1489 = vadd.f32 %v1398, %v1399
  %1490 = vadd.xlane.f32.xlu0 %v1489
  %v1491 = vpop.xlane.xlu0 %1490
  %v1492 = vadd.f32 %v1400, %v1401
  %1493 = vadd.xlane.f32.xlu0 %v1492
  %v1494 = vpop.xlane.xlu0 %1493
  %v1495 = vadd.f32 %v1402, %v1403
  %1496 = vadd.xlane.f32.xlu0 %v1495
  %v1497 = vpop.xlane.xlu0 %1496
  %v1498 = vadd.f32 %v1404, %v1405
  %1499 = vadd.xlane.f32.xlu0 %v1498
  %v1500 = vpop.xlane.xlu0 %1499
  %v1501 = vadd.f32 %v1406, %v1407
  %1502 = vadd.xlane.f32.xlu0 %v1501
  %v1503 = vpop.xlane.xlu0 %1502
  %v1504 = vadd.f32 %v1410, %v1458
  %v1505 = vadd.f32 %v1413, %v1461
  %v1506 = vadd.f32 %v1416, %v1464
  %v1507 = vadd.f32 %v1419, %v1467
  %v1508 = vadd.f32 %v1422, %v1470
  %v1509 = vadd.f32 %v1425, %v1473
  %v1510 = vadd.f32 %v1428, %v1476
  %v1511 = vadd.f32 %v1431, %v1479
  %v1512 = vadd.f32 %v1434, %v1482
  %v1513 = vadd.f32 %v1437, %v1485
  %v1514 = vadd.f32 %v1440, %v1488
  %v1515 = vadd.f32 %v1443, %v1491
  %v1516 = vadd.f32 %v1446, %v1494
  %v1517 = vadd.f32 %v1449, %v1497
  %v1518 = vadd.f32 %v1452, %v1500
  %v1519 = vadd.f32 %v1455, %v1503
  %v1520 = vmul.f32 %v1328, 0.001953125
  %v1521 = vmul.f32 %v1329, 0.001953125
  %v1522 = vmul.f32 %v1330, 0.001953125
  %v1523 = vmul.f32 %v1331, 0.001953125
  %v1524 = vmul.f32 %v1332, 0.001953125
  %v1525 = vmul.f32 %v1333, 0.001953125
  %v1526 = vmul.f32 %v1334, 0.001953125
  %v1527 = vmul.f32 %v1335, 0.001953125
  %v1528 = vmul.f32 %v1336, 0.001953125
  %v1529 = vmul.f32 %v1337, 0.001953125
  %v1530 = vmul.f32 %v1338, 0.001953125
  %v1531 = vmul.f32 %v1339, 0.001953125
  %v1532 = vmul.f32 %v1340, 0.001953125
  %v1533 = vmul.f32 %v1341, 0.001953125
  %v1534 = vmul.f32 %v1342, 0.001953125
  %v1535 = vmul.f32 %v1343, 0.001953125
  %v1536 = vmul.f32 %v1504, 0.001953125
  %v1537 = vmul.f32 %v1505, 0.001953125
  %v1538 = vmul.f32 %v1506, 0.001953125
  %v1539 = vmul.f32 %v1507, 0.001953125
  %v1540 = vmul.f32 %v1508, 0.001953125
  %v1541 = vmul.f32 %v1509, 0.001953125
  %v1542 = vmul.f32 %v1510, 0.001953125
  %v1543 = vmul.f32 %v1511, 0.001953125
  %v1544 = vmul.f32 %v1512, 0.001953125
  %v1545 = vmul.f32 %v1513, 0.001953125
  %v1546 = vmul.f32 %v1514, 0.001953125
  %v1547 = vmul.f32 %v1515, 0.001953125
  %v1548 = vmul.f32 %v1516, 0.001953125
  %v1549 = vmul.f32 %v1517, 0.001953125
  %v1550 = vmul.f32 %v1518, 0.001953125
  %v1551 = vmul.f32 %v1519, 0.001953125
  %v1552 = vmul.f32 %v1520, %v1520
  %v1553 = vmul.f32 %v1521, %v1521
  %v1554 = vmul.f32 %v1522, %v1522
  %v1555 = vmul.f32 %v1523, %v1523
  %v1556 = vmul.f32 %v1524, %v1524
  %v1557 = vmul.f32 %v1525, %v1525
  %v1558 = vmul.f32 %v1526, %v1526
  %v1559 = vmul.f32 %v1527, %v1527
  %v1560 = vmul.f32 %v1528, %v1528
  %v1561 = vmul.f32 %v1529, %v1529
  %v1562 = vmul.f32 %v1530, %v1530
  %v1563 = vmul.f32 %v1531, %v1531
  %v1564 = vmul.f32 %v1532, %v1532
  %v1565 = vmul.f32 %v1533, %v1533
  %v1566 = vmul.f32 %v1534, %v1534
  %v1567 = vmul.f32 %v1535, %v1535
  %v1568 = vsub.f32 %v1536, %v1552
  %v1569 = vsub.f32 %v1537, %v1553
  %v1570 = vsub.f32 %v1538, %v1554
  %v1571 = vsub.f32 %v1539, %v1555
  %v1572 = vsub.f32 %v1540, %v1556
  %v1573 = vsub.f32 %v1541, %v1557
  %v1574 = vsub.f32 %v1542, %v1558
  %v1575 = vsub.f32 %v1543, %v1559
  %v1576 = vsub.f32 %v1544, %v1560
  %v1577 = vsub.f32 %v1545, %v1561
  %v1578 = vsub.f32 %v1546, %v1562
  %v1579 = vsub.f32 %v1547, %v1563
  %v1580 = vsub.f32 %v1548, %v1564
  %v1581 = vsub.f32 %v1549, %v1565
  %v1582 = vsub.f32 %v1550, %v1566
  %v1583 = vsub.f32 %v1551, %v1567
  %v1584 = vmax.f32 %v1568, 0.0
  %v1585 = vmax.f32 %v1569, 0.0
  %v1586 = vmax.f32 %v1570, 0.0
  %v1587 = vmax.f32 %v1571, 0.0
  %v1588 = vmax.f32 %v1572, 0.0
  %v1589 = vmax.f32 %v1573, 0.0
  %v1590 = vmax.f32 %v1574, 0.0
  %v1591 = vmax.f32 %v1575, 0.0
  %v1592 = vmax.f32 %v1576, 0.0
  %v1593 = vmax.f32 %v1577, 0.0
  %v1594 = vmax.f32 %v1578, 0.0
  %v1595 = vmax.f32 %v1579, 0.0
  %v1596 = vmax.f32 %v1580, 0.0
  %v1597 = vmax.f32 %v1581, 0.0
  %v1598 = vmax.f32 %v1582, 0.0
  %v1599 = vmax.f32 %v1583, 0.0
  %v1600 = vadd.f32 %v1584, 1e-05
  %v1601 = vadd.f32 %v1585, 1e-05
  %v1602 = vadd.f32 %v1586, 1e-05
  %v1603 = vadd.f32 %v1587, 1e-05
  %v1604 = vadd.f32 %v1588, 1e-05
  %v1605 = vadd.f32 %v1589, 1e-05
  %v1606 = vadd.f32 %v1590, 1e-05
  %v1607 = vadd.f32 %v1591, 1e-05
  %v1608 = vadd.f32 %v1592, 1e-05
  %v1609 = vadd.f32 %v1593, 1e-05
  %v1610 = vadd.f32 %v1594, 1e-05
  %v1611 = vadd.f32 %v1595, 1e-05
  %v1612 = vadd.f32 %v1596, 1e-05
  %v1613 = vadd.f32 %v1597, 1e-05
  %v1614 = vadd.f32 %v1598, 1e-05
  %v1615 = vadd.f32 %v1599, 1e-05
  %v1616 = vrsqrt.pop %v1600
  %v1617 = vrsqrt.pop %v1601
  %v1618 = vrsqrt.pop %v1602
  %v1619 = vrsqrt.pop %v1603
  %v1620 = vrsqrt.pop %v1604
  %v1621 = vrsqrt.pop %v1605
  %v1622 = vrsqrt.pop %v1606
  %v1623 = vrsqrt.pop %v1607
  %v1624 = vrsqrt.pop %v1608
  %v1625 = vrsqrt.pop %v1609
  %v1626 = vrsqrt.pop %v1610
  %v1627 = vrsqrt.pop %v1611
  %v1628 = vrsqrt.pop %v1612
  %v1629 = vrsqrt.pop %v1613
  %v1630 = vrsqrt.pop %v1614
  %v1631 = vrsqrt.pop %v1615
  %v1632 = vmul.f32 %v1200, %v1616
  %v1633 = vmul.f32 %v1201, %v1617
  %v1634 = vmul.f32 %v1202, %v1618
  %v1635 = vmul.f32 %v1203, %v1619
  %v1636 = vmul.f32 %v1204, %v1620
  %v1637 = vmul.f32 %v1205, %v1621
  %v1638 = vmul.f32 %v1206, %v1622
  %v1639 = vmul.f32 %v1207, %v1623
  %v1640 = vmul.f32 %v1208, %v1624
  %v1641 = vmul.f32 %v1209, %v1625
  %v1642 = vmul.f32 %v1210, %v1626
  %v1643 = vmul.f32 %v1211, %v1627
  %v1644 = vmul.f32 %v1212, %v1628
  %v1645 = vmul.f32 %v1213, %v1629
  %v1646 = vmul.f32 %v1214, %v1630
  %v1647 = vmul.f32 %v1215, %v1631
  %1649 = vset.pattern.permute.xlu0 0
  %1650 = vperm.xlu0 %1649, %v1632
  %v1651 = vpop.permute.xlu0 %1650
  %1654 = vset.pattern.permute.xlu0 0
  %1655 = vperm.xlu0 %1654, %v1633
  %v1656 = vpop.permute.xlu0 %1655
  %1659 = vset.pattern.permute.xlu0 0
  %1660 = vperm.xlu0 %1659, %v1634
  %v1661 = vpop.permute.xlu0 %1660
  %1664 = vset.pattern.permute.xlu0 0
  %1665 = vperm.xlu0 %1664, %v1635
  %v1666 = vpop.permute.xlu0 %1665
  %1669 = vset.pattern.permute.xlu0 0
  %1670 = vperm.xlu0 %1669, %v1636
  %v1671 = vpop.permute.xlu0 %1670
  %1674 = vset.pattern.permute.xlu0 0
  %1675 = vperm.xlu0 %1674, %v1637
  %v1676 = vpop.permute.xlu0 %1675
  %1679 = vset.pattern.permute.xlu0 0
  %1680 = vperm.xlu0 %1679, %v1638
  %v1681 = vpop.permute.xlu0 %1680
  %1684 = vset.pattern.permute.xlu0 0
  %1685 = vperm.xlu0 %1684, %v1639
  %v1686 = vpop.permute.xlu0 %1685
  %1689 = vset.pattern.permute.xlu0 0
  %1690 = vperm.xlu0 %1689, %v1640
  %v1691 = vpop.permute.xlu0 %1690
  %1694 = vset.pattern.permute.xlu0 0
  %1695 = vperm.xlu0 %1694, %v1641
  %v1696 = vpop.permute.xlu0 %1695
  %1699 = vset.pattern.permute.xlu0 0
  %1700 = vperm.xlu0 %1699, %v1642
  %v1701 = vpop.permute.xlu0 %1700
  %1704 = vset.pattern.permute.xlu0 0
  %1705 = vperm.xlu0 %1704, %v1643
  %v1706 = vpop.permute.xlu0 %1705
  %1709 = vset.pattern.permute.xlu0 0
  %1710 = vperm.xlu0 %1709, %v1644
  %v1711 = vpop.permute.xlu0 %1710
  %1714 = vset.pattern.permute.xlu0 0
  %1715 = vperm.xlu0 %1714, %v1645
  %v1716 = vpop.permute.xlu0 %1715
  %1719 = vset.pattern.permute.xlu0 0
  %1720 = vperm.xlu0 %1719, %v1646
  %v1721 = vpop.permute.xlu0 %1720
  %1724 = vset.pattern.permute.xlu0 0
  %1725 = vperm.xlu0 %1724, %v1647
  %v1726 = vpop.permute.xlu0 %1725
  %v1728 = vmul.f32 %v1009, %v1651
  %v1729 = vmul.f32 %v1011, %v1651
  %v1730 = vmul.f32 %v1013, %v1656
  %v1731 = vmul.f32 %v1015, %v1656
  %v1732 = vmul.f32 %v1019, %v1661
  %v1733 = vmul.f32 %v1021, %v1661
  %v1734 = vmul.f32 %v1023, %v1666
  %v1735 = vmul.f32 %v1025, %v1666
  %v1736 = vmul.f32 %v1029, %v1671
  %v1737 = vmul.f32 %v1031, %v1671
  %v1738 = vmul.f32 %v1033, %v1676
  %v1739 = vmul.f32 %v1035, %v1676
  %v1740 = vmul.f32 %v1039, %v1681
  %v1741 = vmul.f32 %v1041, %v1681
  %v1742 = vmul.f32 %v1043, %v1686
  %v1743 = vmul.f32 %v1045, %v1686
  %v1744 = vmul.f32 %v1049, %v1691
  %v1745 = vmul.f32 %v1051, %v1691
  %v1746 = vmul.f32 %v1053, %v1696
  %v1747 = vmul.f32 %v1055, %v1696
  %v1748 = vmul.f32 %v1059, %v1701
  %v1749 = vmul.f32 %v1061, %v1701
  %v1750 = vmul.f32 %v1063, %v1706
  %v1751 = vmul.f32 %v1065, %v1706
  %v1752 = vmul.f32 %v1069, %v1711
  %v1753 = vmul.f32 %v1071, %v1711
  %v1754 = vmul.f32 %v1073, %v1716
  %v1755 = vmul.f32 %v1075, %v1716
  %v1756 = vmul.f32 %v1079, %v1721
  %v1757 = vmul.f32 %v1081, %v1721
  %v1758 = vmul.f32 %v1083, %v1726
  %v1759 = vmul.f32 %v1085, %v1726
  %v1760 = vmul.f32 %v1122, %v1651
  %v1761 = vmul.f32 %v1124, %v1651
  %v1762 = vmul.f32 %v1126, %v1656
  %v1763 = vmul.f32 %v1128, %v1656
  %v1764 = vmul.f32 %v1132, %v1661
  %v1765 = vmul.f32 %v1134, %v1661
  %v1766 = vmul.f32 %v1136, %v1666
  %v1767 = vmul.f32 %v1138, %v1666
  %v1768 = vmul.f32 %v1142, %v1671
  %v1769 = vmul.f32 %v1144, %v1671
  %v1770 = vmul.f32 %v1146, %v1676
  %v1771 = vmul.f32 %v1148, %v1676
  %v1772 = vmul.f32 %v1152, %v1681
  %v1773 = vmul.f32 %v1154, %v1681
  %v1774 = vmul.f32 %v1156, %v1686
  %v1775 = vmul.f32 %v1158, %v1686
  %v1776 = vmul.f32 %v1162, %v1691
  %v1777 = vmul.f32 %v1164, %v1691
  %v1778 = vmul.f32 %v1166, %v1696
  %v1779 = vmul.f32 %v1168, %v1696
  %v1780 = vmul.f32 %v1172, %v1701
  %v1781 = vmul.f32 %v1174, %v1701
  %v1782 = vmul.f32 %v1176, %v1706
  %v1783 = vmul.f32 %v1178, %v1706
  %v1784 = vmul.f32 %v1182, %v1711
  %v1785 = vmul.f32 %v1184, %v1711
  %v1786 = vmul.f32 %v1186, %v1716
  %v1787 = vmul.f32 %v1188, %v1716
  %v1788 = vmul.f32 %v1192, %v1721
  %v1789 = vmul.f32 %v1194, %v1721
  %v1790 = vmul.f32 %v1196, %v1726
  %v1791 = vmul.f32 %v1198, %v1726
  %v1792 = vmul.f32 %v1520, %v1632
  %v1793 = vmul.f32 %v1521, %v1633
  %v1794 = vmul.f32 %v1522, %v1634
  %v1795 = vmul.f32 %v1523, %v1635
  %v1796 = vmul.f32 %v1524, %v1636
  %v1797 = vmul.f32 %v1525, %v1637
  %v1798 = vmul.f32 %v1526, %v1638
  %v1799 = vmul.f32 %v1527, %v1639
  %v1800 = vmul.f32 %v1528, %v1640
  %v1801 = vmul.f32 %v1529, %v1641
  %v1802 = vmul.f32 %v1530, %v1642
  %v1803 = vmul.f32 %v1531, %v1643
  %v1804 = vmul.f32 %v1532, %v1644
  %v1805 = vmul.f32 %v1533, %v1645
  %v1806 = vmul.f32 %v1534, %v1646
  %v1807 = vmul.f32 %v1535, %v1647
  %v1808 = vsub.f32 %v1216, %v1792
  %v1809 = vsub.f32 %v1217, %v1793
  %v1810 = vsub.f32 %v1218, %v1794
  %v1811 = vsub.f32 %v1219, %v1795
  %v1812 = vsub.f32 %v1220, %v1796
  %v1813 = vsub.f32 %v1221, %v1797
  %v1814 = vsub.f32 %v1222, %v1798
  %v1815 = vsub.f32 %v1223, %v1799
  %v1816 = vsub.f32 %v1224, %v1800
  %v1817 = vsub.f32 %v1225, %v1801
  %v1818 = vsub.f32 %v1226, %v1802
  %v1819 = vsub.f32 %v1227, %v1803
  %v1820 = vsub.f32 %v1228, %v1804
  %v1821 = vsub.f32 %v1229, %v1805
  %v1822 = vsub.f32 %v1230, %v1806
  %v1823 = vsub.f32 %v1231, %v1807
  %1825 = vset.pattern.permute.xlu0 0
  %1826 = vperm.xlu0 %1825, %v1808
  %v1827 = vpop.permute.xlu0 %1826
  %1830 = vset.pattern.permute.xlu0 0
  %1831 = vperm.xlu0 %1830, %v1809
  %v1832 = vpop.permute.xlu0 %1831
  %1835 = vset.pattern.permute.xlu0 0
  %1836 = vperm.xlu0 %1835, %v1810
  %v1837 = vpop.permute.xlu0 %1836
  %1840 = vset.pattern.permute.xlu0 0
  %1841 = vperm.xlu0 %1840, %v1811
  %v1842 = vpop.permute.xlu0 %1841
  %1845 = vset.pattern.permute.xlu0 0
  %1846 = vperm.xlu0 %1845, %v1812
  %v1847 = vpop.permute.xlu0 %1846
  %1850 = vset.pattern.permute.xlu0 0
  %1851 = vperm.xlu0 %1850, %v1813
  %v1852 = vpop.permute.xlu0 %1851
  %1855 = vset.pattern.permute.xlu0 0
  %1856 = vperm.xlu0 %1855, %v1814
  %v1857 = vpop.permute.xlu0 %1856
  %1860 = vset.pattern.permute.xlu0 0
  %1861 = vperm.xlu0 %1860, %v1815
  %v1862 = vpop.permute.xlu0 %1861
  %1865 = vset.pattern.permute.xlu0 0
  %1866 = vperm.xlu0 %1865, %v1816
  %v1867 = vpop.permute.xlu0 %1866
  %1870 = vset.pattern.permute.xlu0 0
  %1871 = vperm.xlu0 %1870, %v1817
  %v1872 = vpop.permute.xlu0 %1871
  %1875 = vset.pattern.permute.xlu0 0
  %1876 = vperm.xlu0 %1875, %v1818
  %v1877 = vpop.permute.xlu0 %1876
  %1880 = vset.pattern.permute.xlu0 0
  %1881 = vperm.xlu0 %1880, %v1819
  %v1882 = vpop.permute.xlu0 %1881
  %1885 = vset.pattern.permute.xlu0 0
  %1886 = vperm.xlu0 %1885, %v1820
  %v1887 = vpop.permute.xlu0 %1886
  %1890 = vset.pattern.permute.xlu0 0
  %1891 = vperm.xlu0 %1890, %v1821
  %v1892 = vpop.permute.xlu0 %1891
  %1895 = vset.pattern.permute.xlu0 0
  %1896 = vperm.xlu0 %1895, %v1822
  %v1897 = vpop.permute.xlu0 %1896
  %1900 = vset.pattern.permute.xlu0 0
  %1901 = vperm.xlu0 %1900, %v1823
  %v1902 = vpop.permute.xlu0 %1901
  %v1904 = vadd.f32 %v1728, %v1827
  %v1905 = vadd.f32 %v1729, %v1827
  %v1906 = vadd.f32 %v1730, %v1832
  %v1907 = vadd.f32 %v1731, %v1832
  %v1908 = vadd.f32 %v1732, %v1837
  %v1909 = vadd.f32 %v1733, %v1837
  %v1910 = vadd.f32 %v1734, %v1842
  %v1911 = vadd.f32 %v1735, %v1842
  %v1912 = vadd.f32 %v1736, %v1847
  %v1913 = vadd.f32 %v1737, %v1847
  %v1914 = vadd.f32 %v1738, %v1852
  %v1915 = vadd.f32 %v1739, %v1852
  %v1916 = vadd.f32 %v1740, %v1857
  %v1917 = vadd.f32 %v1741, %v1857
  %v1918 = vadd.f32 %v1742, %v1862
  %v1919 = vadd.f32 %v1743, %v1862
  %v1920 = vadd.f32 %v1744, %v1867
  %v1921 = vadd.f32 %v1745, %v1867
  %v1922 = vadd.f32 %v1746, %v1872
  %v1923 = vadd.f32 %v1747, %v1872
  %v1924 = vadd.f32 %v1748, %v1877
  %v1925 = vadd.f32 %v1749, %v1877
  %v1926 = vadd.f32 %v1750, %v1882
  %v1927 = vadd.f32 %v1751, %v1882
  %v1928 = vadd.f32 %v1752, %v1887
  %v1929 = vadd.f32 %v1753, %v1887
  %v1930 = vadd.f32 %v1754, %v1892
  %v1931 = vadd.f32 %v1755, %v1892
  %v1932 = vadd.f32 %v1756, %v1897
  %v1933 = vadd.f32 %v1757, %v1897
  %v1934 = vadd.f32 %v1758, %v1902
  %v1935 = vadd.f32 %v1759, %v1902
  %v1936 = vadd.f32 %v1760, %v1827
  %v1937 = vadd.f32 %v1761, %v1827
  %v1938 = vadd.f32 %v1762, %v1832
  %v1939 = vadd.f32 %v1763, %v1832
  %v1940 = vadd.f32 %v1764, %v1837
  %v1941 = vadd.f32 %v1765, %v1837
  %v1942 = vadd.f32 %v1766, %v1842
  %v1943 = vadd.f32 %v1767, %v1842
  %v1944 = vadd.f32 %v1768, %v1847
  %v1945 = vadd.f32 %v1769, %v1847
  %v1946 = vadd.f32 %v1770, %v1852
  %v1947 = vadd.f32 %v1771, %v1852
  %v1948 = vadd.f32 %v1772, %v1857
  %v1949 = vadd.f32 %v1773, %v1857
  %v1950 = vadd.f32 %v1774, %v1862
  %v1951 = vadd.f32 %v1775, %v1862
  %v1952 = vadd.f32 %v1776, %v1867
  %v1953 = vadd.f32 %v1777, %v1867
  %v1954 = vadd.f32 %v1778, %v1872
  %v1955 = vadd.f32 %v1779, %v1872
  %v1956 = vadd.f32 %v1780, %v1877
  %v1957 = vadd.f32 %v1781, %v1877
  %v1958 = vadd.f32 %v1782, %v1882
  %v1959 = vadd.f32 %v1783, %v1882
  %v1960 = vadd.f32 %v1784, %v1887
  %v1961 = vadd.f32 %v1785, %v1887
  %v1962 = vadd.f32 %v1786, %v1892
  %v1963 = vadd.f32 %v1787, %v1892
  %v1964 = vadd.f32 %v1788, %v1897
  %v1965 = vadd.f32 %v1789, %v1897
  %v1966 = vadd.f32 %v1790, %v1902
  %v1967 = vadd.f32 %v1791, %v1902
  %v1968 = vsub.f32 0.0, %v1904
  %v1969 = vsub.f32 0.0, %v1905
  %v1970 = vsub.f32 0.0, %v1906
  %v1971 = vsub.f32 0.0, %v1907
  %v1972 = vsub.f32 0.0, %v1908
  %v1973 = vsub.f32 0.0, %v1909
  %v1974 = vsub.f32 0.0, %v1910
  %v1975 = vsub.f32 0.0, %v1911
  %v1976 = vsub.f32 0.0, %v1912
  %v1977 = vsub.f32 0.0, %v1913
  %v1978 = vsub.f32 0.0, %v1914
  %v1979 = vsub.f32 0.0, %v1915
  %v1980 = vsub.f32 0.0, %v1916
  %v1981 = vsub.f32 0.0, %v1917
  %v1982 = vsub.f32 0.0, %v1918
  %v1983 = vsub.f32 0.0, %v1919
  %v1984 = vsub.f32 0.0, %v1920
  %v1985 = vsub.f32 0.0, %v1921
  %v1986 = vsub.f32 0.0, %v1922
  %v1987 = vsub.f32 0.0, %v1923
  %v1988 = vsub.f32 0.0, %v1924
  %v1989 = vsub.f32 0.0, %v1925
  %v1990 = vsub.f32 0.0, %v1926
  %v1991 = vsub.f32 0.0, %v1927
  %v1992 = vsub.f32 0.0, %v1928
  %v1993 = vsub.f32 0.0, %v1929
  %v1994 = vsub.f32 0.0, %v1930
  %v1995 = vsub.f32 0.0, %v1931
  %v1996 = vsub.f32 0.0, %v1932
  %v1997 = vsub.f32 0.0, %v1933
  %v1998 = vsub.f32 0.0, %v1934
  %v1999 = vsub.f32 0.0, %v1935
  %v2000 = vsub.f32 0.0, %v1936
  %v2001 = vsub.f32 0.0, %v1937
  %v2002 = vsub.f32 0.0, %v1938
  %v2003 = vsub.f32 0.0, %v1939
  %v2004 = vsub.f32 0.0, %v1940
  %v2005 = vsub.f32 0.0, %v1941
  %v2006 = vsub.f32 0.0, %v1942
  %v2007 = vsub.f32 0.0, %v1943
  %v2008 = vsub.f32 0.0, %v1944
  %v2009 = vsub.f32 0.0, %v1945
  %v2010 = vsub.f32 0.0, %v1946
  %v2011 = vsub.f32 0.0, %v1947
  %v2012 = vsub.f32 0.0, %v1948
  %v2013 = vsub.f32 0.0, %v1949
  %v2014 = vsub.f32 0.0, %v1950
  %v2015 = vsub.f32 0.0, %v1951
  %v2016 = vsub.f32 0.0, %v1952
  %v2017 = vsub.f32 0.0, %v1953
  %v2018 = vsub.f32 0.0, %v1954
  %v2019 = vsub.f32 0.0, %v1955
  %v2020 = vsub.f32 0.0, %v1956
  %v2021 = vsub.f32 0.0, %v1957
  %v2022 = vsub.f32 0.0, %v1958
  %v2023 = vsub.f32 0.0, %v1959
  %v2024 = vsub.f32 0.0, %v1960
  %v2025 = vsub.f32 0.0, %v1961
  %v2026 = vsub.f32 0.0, %v1962
  %v2027 = vsub.f32 0.0, %v1963
  %v2028 = vsub.f32 0.0, %v1964
  %v2029 = vsub.f32 0.0, %v1965
  %v2030 = vsub.f32 0.0, %v1966
  %v2031 = vsub.f32 0.0, %v1967
  %v2032 = vmul.f32 %v1968, 1.442695
  %v2033 = vpow.pop %v2032
  %v2034 = vmul.f32 %v1969, 1.442695
  %v2035 = vpow.pop %v2034
  %v2036 = vmul.f32 %v1970, 1.442695
  %v2037 = vpow.pop %v2036
  %v2038 = vmul.f32 %v1971, 1.442695
  %v2039 = vpow.pop %v2038
  %v2040 = vmul.f32 %v1972, 1.442695
  %v2041 = vpow.pop %v2040
  %v2042 = vmul.f32 %v1973, 1.442695
  %v2043 = vpow.pop %v2042
  %v2044 = vmul.f32 %v1974, 1.442695
  %v2045 = vpow.pop %v2044
  %v2046 = vmul.f32 %v1975, 1.442695
  %v2047 = vpow.pop %v2046
  %v2048 = vmul.f32 %v1976, 1.442695
  %v2049 = vpow.pop %v2048
  %v2050 = vmul.f32 %v1977, 1.442695
  %v2051 = vpow.pop %v2050
  %v2052 = vmul.f32 %v1978, 1.442695
  %v2053 = vpow.pop %v2052
  %v2054 = vmul.f32 %v1979, 1.442695
  %v2055 = vpow.pop %v2054
  %v2056 = vmul.f32 %v1980, 1.442695
  %v2057 = vpow.pop %v2056
  %v2058 = vmul.f32 %v1981, 1.442695
  %v2059 = vpow.pop %v2058
  %v2060 = vmul.f32 %v1982, 1.442695
  %v2061 = vpow.pop %v2060
  %v2062 = vmul.f32 %v1983, 1.442695
  %v2063 = vpow.pop %v2062
  %v2064 = vmul.f32 %v1984, 1.442695
  %v2065 = vpow.pop %v2064
  %v2066 = vmul.f32 %v1985, 1.442695
  %v2067 = vpow.pop %v2066
  %v2068 = vmul.f32 %v1986, 1.442695
  %v2069 = vpow.pop %v2068
  %v2070 = vmul.f32 %v1987, 1.442695
  %v2071 = vpow.pop %v2070
  %v2072 = vmul.f32 %v1988, 1.442695
  %v2073 = vpow.pop %v2072
  %v2074 = vmul.f32 %v1989, 1.442695
  %v2075 = vpow.pop %v2074
  %v2076 = vmul.f32 %v1990, 1.442695
  %v2077 = vpow.pop %v2076
  %v2078 = vmul.f32 %v1991, 1.442695
  %v2079 = vpow.pop %v2078
  %v2080 = vmul.f32 %v1992, 1.442695
  %v2081 = vpow.pop %v2080
  %v2082 = vmul.f32 %v1993, 1.442695
  %v2083 = vpow.pop %v2082
  %v2084 = vmul.f32 %v1994, 1.442695
  %v2085 = vpow.pop %v2084
  %v2086 = vmul.f32 %v1995, 1.442695
  %v2087 = vpow.pop %v2086
  %v2088 = vmul.f32 %v1996, 1.442695
  %v2089 = vpow.pop %v2088
  %v2090 = vmul.f32 %v1997, 1.442695
  %v2091 = vpow.pop %v2090
  %v2092 = vmul.f32 %v1998, 1.442695
  %v2093 = vpow.pop %v2092
  %v2094 = vmul.f32 %v1999, 1.442695
  %v2095 = vpow.pop %v2094
  %v2096 = vmul.f32 %v2000, 1.442695
  %v2097 = vpow.pop %v2096
  %v2098 = vmul.f32 %v2001, 1.442695
  %v2099 = vpow.pop %v2098
  %v2100 = vmul.f32 %v2002, 1.442695
  %v2101 = vpow.pop %v2100
  %v2102 = vmul.f32 %v2003, 1.442695
  %v2103 = vpow.pop %v2102
  %v2104 = vmul.f32 %v2004, 1.442695
  %v2105 = vpow.pop %v2104
  %v2106 = vmul.f32 %v2005, 1.442695
  %v2107 = vpow.pop %v2106
  %v2108 = vmul.f32 %v2006, 1.442695
  %v2109 = vpow.pop %v2108
  %v2110 = vmul.f32 %v2007, 1.442695
  %v2111 = vpow.pop %v2110
  %v2112 = vmul.f32 %v2008, 1.442695
  %v2113 = vpow.pop %v2112
  %v2114 = vmul.f32 %v2009, 1.442695
  %v2115 = vpow.pop %v2114
  %v2116 = vmul.f32 %v2010, 1.442695
  %v2117 = vpow.pop %v2116
  %v2118 = vmul.f32 %v2011, 1.442695
  %v2119 = vpow.pop %v2118
  %v2120 = vmul.f32 %v2012, 1.442695
  %v2121 = vpow.pop %v2120
  %v2122 = vmul.f32 %v2013, 1.442695
  %v2123 = vpow.pop %v2122
  %v2124 = vmul.f32 %v2014, 1.442695
  %v2125 = vpow.pop %v2124
  %v2126 = vmul.f32 %v2015, 1.442695
  %v2127 = vpow.pop %v2126
  %v2128 = vmul.f32 %v2016, 1.442695
  %v2129 = vpow.pop %v2128
  %v2130 = vmul.f32 %v2017, 1.442695
  %v2131 = vpow.pop %v2130
  %v2132 = vmul.f32 %v2018, 1.442695
  %v2133 = vpow.pop %v2132
  %v2134 = vmul.f32 %v2019, 1.442695
  %v2135 = vpow.pop %v2134
  %v2136 = vmul.f32 %v2020, 1.442695
  %v2137 = vpow.pop %v2136
  %v2138 = vmul.f32 %v2021, 1.442695
  %v2139 = vpow.pop %v2138
  %v2140 = vmul.f32 %v2022, 1.442695
  %v2141 = vpow.pop %v2140
  %v2142 = vmul.f32 %v2023, 1.442695
  %v2143 = vpow.pop %v2142
  %v2144 = vmul.f32 %v2024, 1.442695
  %v2145 = vpow.pop %v2144
  %v2146 = vmul.f32 %v2025, 1.442695
  %v2147 = vpow.pop %v2146
  %v2148 = vmul.f32 %v2026, 1.442695
  %v2149 = vpow.pop %v2148
  %v2150 = vmul.f32 %v2027, 1.442695
  %v2151 = vpow.pop %v2150
  %v2152 = vmul.f32 %v2028, 1.442695
  %v2153 = vpow.pop %v2152
  %v2154 = vmul.f32 %v2029, 1.442695
  %v2155 = vpow.pop %v2154
  %v2156 = vmul.f32 %v2030, 1.442695
  %v2157 = vpow.pop %v2156
  %v2158 = vmul.f32 %v2031, 1.442695
  %v2159 = vpow.pop %v2158
  %v2160 = vadd.f32 %v2033, 1.0
  %v2161 = vadd.f32 %v2035, 1.0
  %v2162 = vadd.f32 %v2037, 1.0
  %v2163 = vadd.f32 %v2039, 1.0
  %v2164 = vadd.f32 %v2041, 1.0
  %v2165 = vadd.f32 %v2043, 1.0
  %v2166 = vadd.f32 %v2045, 1.0
  %v2167 = vadd.f32 %v2047, 1.0
  %v2168 = vadd.f32 %v2049, 1.0
  %v2169 = vadd.f32 %v2051, 1.0
  %v2170 = vadd.f32 %v2053, 1.0
  %v2171 = vadd.f32 %v2055, 1.0
  %v2172 = vadd.f32 %v2057, 1.0
  %v2173 = vadd.f32 %v2059, 1.0
  %v2174 = vadd.f32 %v2061, 1.0
  %v2175 = vadd.f32 %v2063, 1.0
  %v2176 = vadd.f32 %v2065, 1.0
  %v2177 = vadd.f32 %v2067, 1.0
  %v2178 = vadd.f32 %v2069, 1.0
  %v2179 = vadd.f32 %v2071, 1.0
  %v2180 = vadd.f32 %v2073, 1.0
  %v2181 = vadd.f32 %v2075, 1.0
  %v2182 = vadd.f32 %v2077, 1.0
  %v2183 = vadd.f32 %v2079, 1.0
  %v2184 = vadd.f32 %v2081, 1.0
  %v2185 = vadd.f32 %v2083, 1.0
  %v2186 = vadd.f32 %v2085, 1.0
  %v2187 = vadd.f32 %v2087, 1.0
  %v2188 = vadd.f32 %v2089, 1.0
  %v2189 = vadd.f32 %v2091, 1.0
  %v2190 = vadd.f32 %v2093, 1.0
  %v2191 = vadd.f32 %v2095, 1.0
  %v2192 = vadd.f32 %v2097, 1.0
  %v2193 = vadd.f32 %v2099, 1.0
  %v2194 = vadd.f32 %v2101, 1.0
  %v2195 = vadd.f32 %v2103, 1.0
  %v2196 = vadd.f32 %v2105, 1.0
  %v2197 = vadd.f32 %v2107, 1.0
  %v2198 = vadd.f32 %v2109, 1.0
  %v2199 = vadd.f32 %v2111, 1.0
  %v2200 = vadd.f32 %v2113, 1.0
  %v2201 = vadd.f32 %v2115, 1.0
  %v2202 = vadd.f32 %v2117, 1.0
  %v2203 = vadd.f32 %v2119, 1.0
  %v2204 = vadd.f32 %v2121, 1.0
  %v2205 = vadd.f32 %v2123, 1.0
  %v2206 = vadd.f32 %v2125, 1.0
  %v2207 = vadd.f32 %v2127, 1.0
  %v2208 = vadd.f32 %v2129, 1.0
  %v2209 = vadd.f32 %v2131, 1.0
  %v2210 = vadd.f32 %v2133, 1.0
  %v2211 = vadd.f32 %v2135, 1.0
  %v2212 = vadd.f32 %v2137, 1.0
  %v2213 = vadd.f32 %v2139, 1.0
  %v2214 = vadd.f32 %v2141, 1.0
  %v2215 = vadd.f32 %v2143, 1.0
  %v2216 = vadd.f32 %v2145, 1.0
  %v2217 = vadd.f32 %v2147, 1.0
  %v2218 = vadd.f32 %v2149, 1.0
  %v2219 = vadd.f32 %v2151, 1.0
  %v2220 = vadd.f32 %v2153, 1.0
  %v2221 = vadd.f32 %v2155, 1.0
  %v2222 = vadd.f32 %v2157, 1.0
  %v2223 = vadd.f32 %v2159, 1.0
  %v2224 = vrcp.pop %v2160
  %v2225 = vrcp.pop %v2161
  %v2226 = vrcp.pop %v2162
  %v2227 = vrcp.pop %v2163
  %v2228 = vrcp.pop %v2164
  %v2229 = vrcp.pop %v2165
  %v2230 = vrcp.pop %v2166
  %v2231 = vrcp.pop %v2167
  %v2232 = vrcp.pop %v2168
  %v2233 = vrcp.pop %v2169
  %v2234 = vrcp.pop %v2170
  %v2235 = vrcp.pop %v2171
  %v2236 = vrcp.pop %v2172
  %v2237 = vrcp.pop %v2173
  %v2238 = vrcp.pop %v2174
  %v2239 = vrcp.pop %v2175
  %v2240 = vrcp.pop %v2176
  %v2241 = vrcp.pop %v2177
  %v2242 = vrcp.pop %v2178
  %v2243 = vrcp.pop %v2179
  %v2244 = vrcp.pop %v2180
  %v2245 = vrcp.pop %v2181
  %v2246 = vrcp.pop %v2182
  %v2247 = vrcp.pop %v2183
  %v2248 = vrcp.pop %v2184
  %v2249 = vrcp.pop %v2185
  %v2250 = vrcp.pop %v2186
  %v2251 = vrcp.pop %v2187
  %v2252 = vrcp.pop %v2188
  %v2253 = vrcp.pop %v2189
  %v2254 = vrcp.pop %v2190
  %v2255 = vrcp.pop %v2191
  %v2256 = vrcp.pop %v2192
  %v2257 = vrcp.pop %v2193
  %v2258 = vrcp.pop %v2194
  %v2259 = vrcp.pop %v2195
  %v2260 = vrcp.pop %v2196
  %v2261 = vrcp.pop %v2197
  %v2262 = vrcp.pop %v2198
  %v2263 = vrcp.pop %v2199
  %v2264 = vrcp.pop %v2200
  %v2265 = vrcp.pop %v2201
  %v2266 = vrcp.pop %v2202
  %v2267 = vrcp.pop %v2203
  %v2268 = vrcp.pop %v2204
  %v2269 = vrcp.pop %v2205
  %v2270 = vrcp.pop %v2206
  %v2271 = vrcp.pop %v2207
  %v2272 = vrcp.pop %v2208
  %v2273 = vrcp.pop %v2209
  %v2274 = vrcp.pop %v2210
  %v2275 = vrcp.pop %v2211
  %v2276 = vrcp.pop %v2212
  %v2277 = vrcp.pop %v2213
  %v2278 = vrcp.pop %v2214
  %v2279 = vrcp.pop %v2215
  %v2280 = vrcp.pop %v2216
  %v2281 = vrcp.pop %v2217
  %v2282 = vrcp.pop %v2218
  %v2283 = vrcp.pop %v2219
  %v2284 = vrcp.pop %v2220
  %v2285 = vrcp.pop %v2221
  %v2286 = vrcp.pop %v2222
  %v2287 = vrcp.pop %v2223
  %v2288 = vmul.f32 %v1904, %v2224
  %v2289 = vmul.f32 %v1905, %v2225
  %v2290 = vmul.f32 %v1906, %v2226
  %v2291 = vmul.f32 %v1907, %v2227
  %v2292 = vmul.f32 %v1908, %v2228
  %v2293 = vmul.f32 %v1909, %v2229
  %v2294 = vmul.f32 %v1910, %v2230
  %v2295 = vmul.f32 %v1911, %v2231
  %v2296 = vmul.f32 %v1912, %v2232
  %v2297 = vmul.f32 %v1913, %v2233
  %v2298 = vmul.f32 %v1914, %v2234
  %v2299 = vmul.f32 %v1915, %v2235
  %v2300 = vmul.f32 %v1916, %v2236
  %v2301 = vmul.f32 %v1917, %v2237
  %v2302 = vmul.f32 %v1918, %v2238
  %v2303 = vmul.f32 %v1919, %v2239
  %v2304 = vmul.f32 %v1920, %v2240
  %v2305 = vmul.f32 %v1921, %v2241
  %v2306 = vmul.f32 %v1922, %v2242
  %v2307 = vmul.f32 %v1923, %v2243
  %v2308 = vmul.f32 %v1924, %v2244
  %v2309 = vmul.f32 %v1925, %v2245
  %v2310 = vmul.f32 %v1926, %v2246
  %v2311 = vmul.f32 %v1927, %v2247
  %v2312 = vmul.f32 %v1928, %v2248
  %v2313 = vmul.f32 %v1929, %v2249
  %v2314 = vmul.f32 %v1930, %v2250
  %v2315 = vmul.f32 %v1931, %v2251
  %v2316 = vmul.f32 %v1932, %v2252
  %v2317 = vmul.f32 %v1933, %v2253
  %v2318 = vmul.f32 %v1934, %v2254
  %v2319 = vmul.f32 %v1935, %v2255
  %v2320 = vmul.f32 %v1936, %v2256
  %v2321 = vmul.f32 %v1937, %v2257
  %v2322 = vmul.f32 %v1938, %v2258
  %v2323 = vmul.f32 %v1939, %v2259
  %v2324 = vmul.f32 %v1940, %v2260
  %v2325 = vmul.f32 %v1941, %v2261
  %v2326 = vmul.f32 %v1942, %v2262
  %v2327 = vmul.f32 %v1943, %v2263
  %v2328 = vmul.f32 %v1944, %v2264
  %v2329 = vmul.f32 %v1945, %v2265
  %v2330 = vmul.f32 %v1946, %v2266
  %v2331 = vmul.f32 %v1947, %v2267
  %v2332 = vmul.f32 %v1948, %v2268
  %v2333 = vmul.f32 %v1949, %v2269
  %v2334 = vmul.f32 %v1950, %v2270
  %v2335 = vmul.f32 %v1951, %v2271
  %v2336 = vmul.f32 %v1952, %v2272
  %v2337 = vmul.f32 %v1953, %v2273
  %v2338 = vmul.f32 %v1954, %v2274
  %v2339 = vmul.f32 %v1955, %v2275
  %v2340 = vmul.f32 %v1956, %v2276
  %v2341 = vmul.f32 %v1957, %v2277
  %v2342 = vmul.f32 %v1958, %v2278
  %v2343 = vmul.f32 %v1959, %v2279
  %v2344 = vmul.f32 %v1960, %v2280
  %v2345 = vmul.f32 %v1961, %v2281
  %v2346 = vmul.f32 %v1962, %v2282
  %v2347 = vmul.f32 %v1963, %v2283
  %v2348 = vmul.f32 %v1964, %v2284
  %v2349 = vmul.f32 %v1965, %v2285
  %v2350 = vmul.f32 %v1966, %v2286
  %v2351 = vmul.f32 %v1967, %v2287
  %v2352 = vadd.f32 %v27, %v2288
  %v2353 = vadd.f32 %v28, %v2289
  %v2354 = vadd.f32 %v29, %v2290
  %v2355 = vadd.f32 %v30, %v2291
  %v2356 = vadd.f32 %v31, %v2292
  %v2357 = vadd.f32 %v32, %v2293
  %v2358 = vadd.f32 %v33, %v2294
  %v2359 = vadd.f32 %v34, %v2295
  %v2360 = vadd.f32 %v35, %v2296
  %v2361 = vadd.f32 %v36, %v2297
  %v2362 = vadd.f32 %v37, %v2298
  %v2363 = vadd.f32 %v38, %v2299
  %v2364 = vadd.f32 %v39, %v2300
  %v2365 = vadd.f32 %v40, %v2301
  %v2366 = vadd.f32 %v41, %v2302
  %v2367 = vadd.f32 %v42, %v2303
  %v2368 = vadd.f32 %v43, %v2304
  %v2369 = vadd.f32 %v44, %v2305
  %v2370 = vadd.f32 %v45, %v2306
  %v2371 = vadd.f32 %v46, %v2307
  %v2372 = vadd.f32 %v47, %v2308
  %v2373 = vadd.f32 %v48, %v2309
  %v2374 = vadd.f32 %v49, %v2310
  %v2375 = vadd.f32 %v50, %v2311
  %v2376 = vadd.f32 %v51, %v2312
  %v2377 = vadd.f32 %v52, %v2313
  %v2378 = vadd.f32 %v53, %v2314
  %v2379 = vadd.f32 %v54, %v2315
  %v2380 = vadd.f32 %v55, %v2316
  %v2381 = vadd.f32 %v56, %v2317
  %v2382 = vadd.f32 %v57, %v2318
  %v2383 = vadd.f32 %v58, %v2319
  %v2384 = vadd.f32 %v59, %v2320
  %v2385 = vadd.f32 %v60, %v2321
  %v2386 = vadd.f32 %v61, %v2322
  %v2387 = vadd.f32 %v62, %v2323
  %v2388 = vadd.f32 %v63, %v2324
  %v2389 = vadd.f32 %v64, %v2325
  %v2390 = vadd.f32 %v65, %v2326
  %v2391 = vadd.f32 %v66, %v2327
  %v2392 = vadd.f32 %v67, %v2328
  %v2393 = vadd.f32 %v68, %v2329
  %v2394 = vadd.f32 %v69, %v2330
  %v2395 = vadd.f32 %v70, %v2331
  %v2396 = vadd.f32 %v71, %v2332
  %v2397 = vadd.f32 %v72, %v2333
  %v2398 = vadd.f32 %v73, %v2334
  %v2399 = vadd.f32 %v74, %v2335
  %v2400 = vadd.f32 %v75, %v2336
  %v2401 = vadd.f32 %v76, %v2337
  %v2402 = vadd.f32 %v77, %v2338
  %v2403 = vadd.f32 %v78, %v2339
  %v2404 = vadd.f32 %v79, %v2340
  %v2405 = vadd.f32 %v80, %v2341
  %v2406 = vadd.f32 %v81, %v2342
  %v2407 = vadd.f32 %v82, %v2343
  %v2408 = vadd.f32 %v83, %v2344
  %v2409 = vadd.f32 %v84, %v2345
  %v2410 = vadd.f32 %v85, %v2346
  %v2411 = vadd.f32 %v86, %v2347
  %v2412 = vadd.f32 %v87, %v2348
  %v2413 = vadd.f32 %v88, %v2349
  %v2414 = vadd.f32 %v89, %v2350
  %v2415 = vadd.f32 %v90, %v2351
  %2416 = vst [vmem:[%s7] sm:$0xff] %v2352
  %2417 = vst [vmem:[%s7 + $0x8] sm:$0xff] %v2353
  %2418 = vst [vmem:[%s7 + $0x10] sm:$0xff] %v2354
  %2419 = vst [vmem:[%s7 + $0x18] sm:$0xff] %v2355
  %2420 = vst [vmem:[%s7 + $0x20] sm:$0xff] %v2356
  %2421 = vst [vmem:[%s7 + $0x28] sm:$0xff] %v2357
  %2422 = vst [vmem:[%s7 + $0x30] sm:$0xff] %v2358
  %2423 = vst [vmem:[%s7 + $0x38] sm:$0xff] %v2359
  %2424 = vst [vmem:[%s7 + $0x40] sm:$0xff] %v2360
  %2425 = vst [vmem:[%s7 + $0x48] sm:$0xff] %v2361
  %2426 = vst [vmem:[%s7 + $0x50] sm:$0xff] %v2362
  %2427 = vst [vmem:[%s7 + $0x58] sm:$0xff] %v2363
  %2428 = vst [vmem:[%s7 + $0x60] sm:$0xff] %v2364
  %2429 = vst [vmem:[%s7 + $0x68] sm:$0xff] %v2365
  %2430 = vst [vmem:[%s7 + $0x70] sm:$0xff] %v2366
  %2431 = vst [vmem:[%s7 + $0x78] sm:$0xff] %v2367
  %2432 = vst [vmem:[%s7 + $0x80] sm:$0xff] %v2368
  %2433 = vst [vmem:[%s7 + $0x88] sm:$0xff] %v2369
  %2434 = vst [vmem:[%s7 + $0x90] sm:$0xff] %v2370
  %2435 = vst [vmem:[%s7 + $0x98] sm:$0xff] %v2371
  %2436 = vst [vmem:[%s7 + $0xa0] sm:$0xff] %v2372
  %2437 = vst [vmem:[%s7 + $0xa8] sm:$0xff] %v2373
  %2438 = vst [vmem:[%s7 + $0xb0] sm:$0xff] %v2374
  %2439 = vst [vmem:[%s7 + $0xb8] sm:$0xff] %v2375
  %2440 = vst [vmem:[%s7 + $0xc0] sm:$0xff] %v2376
  %2441 = vst [vmem:[%s7 + $0xc8] sm:$0xff] %v2377
  %2442 = vst [vmem:[%s7 + $0xd0] sm:$0xff] %v2378
  %2443 = vst [vmem:[%s7 + $0xd8] sm:$0xff] %v2379
  %2444 = vst [vmem:[%s7 + $0xe0] sm:$0xff] %v2380
  %2445 = vst [vmem:[%s7 + $0xe8] sm:$0xff] %v2381
  %2446 = vst [vmem:[%s7 + $0xf0] sm:$0xff] %v2382
  %2447 = vst [vmem:[%s7 + $0xf8] sm:$0xff] %v2383
  %2448 = vst [vmem:[%s7 + $0x100] sm:$0xff] %v2384
  %2449 = vst [vmem:[%s7 + $0x108] sm:$0xff] %v2385
  %2450 = vst [vmem:[%s7 + $0x110] sm:$0xff] %v2386
  %2451 = vst [vmem:[%s7 + $0x118] sm:$0xff] %v2387
  %2452 = vst [vmem:[%s7 + $0x120] sm:$0xff] %v2388
  %2453 = vst [vmem:[%s7 + $0x128] sm:$0xff] %v2389
  %2454 = vst [vmem:[%s7 + $0x130] sm:$0xff] %v2390
  %2455 = vst [vmem:[%s7 + $0x138] sm:$0xff] %v2391
  %2456 = vst [vmem:[%s7 + $0x140] sm:$0xff] %v2392
  %2457 = vst [vmem:[%s7 + $0x148] sm:$0xff] %v2393
  %2458 = vst [vmem:[%s7 + $0x150] sm:$0xff] %v2394
  %2459 = vst [vmem:[%s7 + $0x158] sm:$0xff] %v2395
  %2460 = vst [vmem:[%s7 + $0x160] sm:$0xff] %v2396
  %2461 = vst [vmem:[%s7 + $0x168] sm:$0xff] %v2397
  %2462 = vst [vmem:[%s7 + $0x170] sm:$0xff] %v2398
  %2463 = vst [vmem:[%s7 + $0x178] sm:$0xff] %v2399
  %2464 = vst [vmem:[%s7 + $0x180] sm:$0xff] %v2400
  %2465 = vst [vmem:[%s7 + $0x188] sm:$0xff] %v2401
  %2466 = vst [vmem:[%s7 + $0x190] sm:$0xff] %v2402
  %2467 = vst [vmem:[%s7 + $0x198] sm:$0xff] %v2403
  %2468 = vst [vmem:[%s7 + $0x1a0] sm:$0xff] %v2404
  %2469 = vst [vmem:[%s7 + $0x1a8] sm:$0xff] %v2405
  %2470 = vst [vmem:[%s7 + $0x1b0] sm:$0xff] %v2406
  %2471 = vst [vmem:[%s7 + $0x1b8] sm:$0xff] %v2407
  %2472 = vst [vmem:[%s7 + $0x1c0] sm:$0xff] %v2408
  %2473 = vst [vmem:[%s7 + $0x1c8] sm:$0xff] %v2409
  %2474 = vst [vmem:[%s7 + $0x1d0] sm:$0xff] %v2410
  %2475 = vst [vmem:[%s7 + $0x1d8] sm:$0xff] %v2411
  %2476 = vst [vmem:[%s7 + $0x1e0] sm:$0xff] %v2412
  %2477 = vst [vmem:[%s7 + $0x1e8] sm:$0xff] %v2413
  %2478 = vst [vmem:[%s7 + $0x1f0] sm:$0xff] %v2414
  %2479 = vst [vmem:[%s7 + $0x1f8] sm:$0xff] %v2415
  // Predicated region
  $region30: #{darknet_block_forward.1} parent=0 // pred_check
    _
  $region31: #{darknet_block_forward.1} parent=0 // pred_check_branch
    %2481 = sbr.rel (0) target = $region33
  $region32: #{darknet_block_forward.1} parent=0 // pred_region
    _
  $region33: #{darknet_block_forward.1} parent=0 // pred_fallthru
    _
  // Predicated region
  $region34: #{darknet_block_forward.1} parent=0 // pred_check
    _
  $region35: #{darknet_block_forward.1} parent=0 // pred_check_branch
    %2483 = sbr.rel (0) target = $region37
  $region36: #{darknet_block_forward.1} parent=0 // pred_region
    _
  $region37: #{darknet_block_forward.1} parent=0 // pred_fallthru
    _

</llo_original>
